<compile_context>
chip_gen: v6e
topology: v6e:2x2x1
jax: 0.10.0
libtpu: 0.0.40
codegen_flags: <defaults>
</compile_context>

<pallas_src>
import functools
import math

import jax
import jax.numpy as jnp
from jax.experimental import pallas as pl
from jax.experimental.pallas import tpu as pltpu


def _gelu_tanh(x):
    # GELU (tanh approximation) -- chosen instantiation of `linear_activation`.
    c = math.sqrt(2.0 / math.pi)
    return 0.5 * x * (1.0 + jnp.tanh(c * (x + 0.044715 * x * x * x)))


def transformer_block_kernel(
    x_ref,            # (B*T, D)  activations (f32)
    wqkv_ref,         # (D, 3D)   fused Q|K|V weights (bf16)
    wo_ref, bo_ref,   # (D, D) bf16, (1, D) f32
    g1_ref, be1_ref,  # (1, D) layernorm_1 gamma/beta (f32)
    g2_ref, be2_ref,  # (1, D) layernorm_2 gamma/beta (f32)
    we_ref, ben_ref,  # (D, 4D) bf16, (1, 4D) f32
    wp_ref, bpr_ref,  # (4D, D) bf16, (1, D) f32
    o_ref,            # (B*T, D)
    attn_sc,          # (B*T, D) f32 VMEM scratch: concatenated head outputs
    *, n_heads, batch, seq,
):
    eps = 1e-10
    x = x_ref[...].astype(jnp.float32)           # (BT, D)
    BT, D = x.shape
    d_head = D // n_heads
    scale = 1.0 / math.sqrt(float(D))            # 1/sqrt(d_model), per reference
    neg_big = jnp.float32(-1e30)                 # finite mask value (no inf-inf NaN)

    def layernorm(v, g, b):
        # torch.std_mean: unbiased std (divide by N-1).
        mean = jnp.mean(v, axis=-1, keepdims=True)
        diff = v - mean
        var = jnp.sum(diff * diff, axis=-1, keepdims=True) * (1.0 / (D - 1))
        inv = pl.reciprocal(jnp.sqrt(var) + eps, approx=True)   # EUP
        return diff * inv * g + b

    def bf16(a):
        return a.astype(jnp.bfloat16)

    # ---- sublayer 1: multi-head attention on LayerNorm_1(x) ----
    xln = layernorm(x, g1_ref[...], be1_ref[...])

    # One wide fused QKV projection: (BT, D) @ (D, 3D) -> (BT, 3D), f32 acc.
    qkv = jnp.dot(bf16(xln), wqkv_ref[...],
                  preferred_element_type=jnp.float32)

    row = jax.lax.broadcasted_iota(jnp.int32, (seq, seq), 0)
    col = jax.lax.broadcasted_iota(jnp.int32, (seq, seq), 1)
    causal = row >= col                          # (T, T), broadcasts over batch

    for h in range(n_heads):                     # static loop over heads
        lo = h * d_head
        q = qkv[:, lo:lo + d_head].reshape(batch, seq, d_head)
        k = qkv[:, D + lo:D + lo + d_head].reshape(batch, seq, d_head)
        v = qkv[:, 2 * D + lo:2 * D + lo + d_head].reshape(batch, seq, d_head)

        # Contract on d_head directly (no explicit k.T / XLU transpose).
        s = jnp.einsum("btd,bsd->bts", bf16(q), bf16(k),
                       preferred_element_type=jnp.float32) * scale
        s = jnp.where(causal, s, neg_big)
        m = jnp.max(s, axis=-1, keepdims=True)
        e = jnp.exp(s - m)
        p = e * pl.reciprocal(jnp.sum(e, axis=-1, keepdims=True), approx=True)
        # attention-pattern dropout: identity (eval mode)
        ho = jnp.einsum("bts,bsd->btd", bf16(p), bf16(v),
                        preferred_element_type=jnp.float32)
        # Write this head's slab at a static lane offset (replaces concat).
        attn_sc[:, lo:lo + d_head] = ho.reshape(batch * seq, d_head)

    attn_out = jnp.dot(bf16(attn_sc[...]), wo_ref[...],
                       preferred_element_type=jnp.float32) + bo_ref[...]
    x1 = x + attn_out

    # ---- sublayer 2: MLP on LayerNorm_2(x1) ----
    xln2 = layernorm(x1, g2_ref[...], be2_ref[...])
    hdn = jnp.dot(bf16(xln2), we_ref[...],
                  preferred_element_type=jnp.float32) + ben_ref[...]
    hdn = _gelu_tanh(hdn)
    mlp_out = jnp.dot(bf16(hdn), wp_ref[...],
                      preferred_element_type=jnp.float32) + bpr_ref[...]

    o_ref[...] = (x1 + mlp_out).astype(o_ref.dtype)


def transformer_block(x, params, n_heads):
    (wq, wk, wv, wo, bo, g1, be1, g2, be2, we, ben, wp, bpr) = params
    B, T, D = x.shape

    # Host-side prep (free XLA reshape/concat/cast, outside the kernel):
    # fuse Q|K|V into one (D, 3D) weight; matmul weights go to bf16.
    wqkv = jnp.concatenate([wq, wk, wv], axis=1).astype(jnp.bfloat16)
    wo_b = wo.astype(jnp.bfloat16)
    we_b = we.astype(jnp.bfloat16)
    wp_b = wp.astype(jnp.bfloat16)
    x2d = x.reshape(B * T, D)                    # batch folded into rows

    kernel = functools.partial(transformer_block_kernel,
                               n_heads=n_heads, batch=B, seq=T)
    vmem = lambda: pl.BlockSpec(memory_space=pltpu.MemorySpace.VMEM)

    # Grid collapsed: single invocation, everything (acts + weights) resident
    # in VMEM.  No grid => no double-buffering of the invariant weights.
    out2d = pl.pallas_call(
        kernel,
        out_shape=jax.ShapeDtypeStruct((B * T, D), x.dtype),
        in_specs=[vmem() for _ in range(12)],
        out_specs=vmem(),
        scratch_shapes=[pltpu.VMEM((B * T, D), jnp.float32)],
    )(x2d, wqkv, wo_b, bo, g1, be1, g2, be2, we_b, ben, wp_b, bpr)
    return out2d.reshape(B, T, D)


def reference_block(x, params, n_heads):
    """Pure-JAX f32 reference replicating the PyTorch forward exactly."""
    (wq, wk, wv, wo, bo, g1, be1, g2, be2, we, ben, wp, bpr) = params
    eps = 1e-10
    B, T, D = x.shape
    d_head = D // n_heads
    scale = 1.0 / math.sqrt(float(D))

    def ln(v, g, b):
        mean = jnp.mean(v, axis=-1, keepdims=True)
        var = jnp.sum((v - mean) ** 2, axis=-1, keepdims=True) / (D - 1)
        return (v - mean) / (jnp.sqrt(var) + eps) * g + b

    xln = ln(x, g1, be1)
    causal = jnp.tril(jnp.ones((T, T), jnp.bool_))
    outs = []
    for h in range(n_heads):
        sl = slice(h * d_head, (h + 1) * d_head)
        q = xln @ wq[:, sl]
        k = xln @ wk[:, sl]
        v = xln @ wv[:, sl]
        s = jnp.einsum("btd,bsd->bts", q, k) * scale
        s = jnp.where(causal[None], s, -jnp.inf)
        p = jax.nn.softmax(s, axis=-1)
        outs.append(jnp.einsum("bts,bsd->btd", p, v))
    attn = jnp.concatenate(outs, axis=-1)
    x1 = x + attn @ wo + bo
    xln2 = ln(x1, g2, be2)
    hdn = _gelu_tanh(xln2 @ we + ben)
    return x1 + hdn @ wp + bpr


if __name__ == "__main__":
    B, T, D, n_heads = 2, 8, 32, 4

    key = jax.random.PRNGKey(0)
    ks = jax.random.split(key, 10)
    sc = 0.05
    # Weights stored already transposed vs torch.nn.Linear, i.e. (in, out),
    # so the kernel computes y = x @ W + b.
    wq = jax.random.normal(ks[0], (D, D), jnp.float32) * sc
    wk = jax.random.normal(ks[1], (D, D), jnp.float32) * sc
    wv = jax.random.normal(ks[2], (D, D), jnp.float32) * sc
    wo = jax.random.normal(ks[3], (D, D), jnp.float32) * sc
    bo = jax.random.normal(ks[4], (1, D), jnp.float32) * sc
    g1 = jnp.ones((1, D), jnp.float32)
    be1 = jnp.zeros((1, D), jnp.float32)
    g2 = jnp.ones((1, D), jnp.float32)
    be2 = jnp.zeros((1, D), jnp.float32)
    we = jax.random.normal(ks[5], (D, 4 * D), jnp.float32) * sc
    ben = jax.random.normal(ks[6], (1, 4 * D), jnp.float32) * sc
    wp = jax.random.normal(ks[7], (4 * D, D), jnp.float32) * sc
    bpr = jax.random.normal(ks[8], (1, D), jnp.float32) * sc
    params = (wq, wk, wv, wo, bo, g1, be1, g2, be2, we, ben, wp, bpr)

    x = jax.random.normal(ks[9], (B, T, D), jnp.float32)

    out = transformer_block(x, params, n_heads)
    out = jax.block_until_ready(out)

    ref = reference_block(x, params, n_heads)
    assert out.shape == (B, T, D)
    # bf16 matmul operands + approx reciprocals => loosened tolerance vs the
    # f32 reference (per review note).
    assert jnp.allclose(out, ref, atol=2e-2, rtol=2e-2), (
        f"max abs err {jnp.max(jnp.abs(out - ref))}")

    print("KERNEL_OK")
</pallas_src>

<mosaic_0001>
module attributes {stable_mosaic.version = 11 : i64} {
  func.func @transformer_block_kernel(%arg0: memref<16x32xf32, #tpu.memory_space<vmem>>, %arg1: memref<32x96xbf16, #tpu.memory_space<vmem>>, %arg2: memref<32x32xbf16, #tpu.memory_space<vmem>>, %arg3: memref<1x32xf32, #tpu.memory_space<vmem>>, %arg4: memref<1x32xf32, #tpu.memory_space<vmem>>, %arg5: memref<1x32xf32, #tpu.memory_space<vmem>>, %arg6: memref<1x32xf32, #tpu.memory_space<vmem>>, %arg7: memref<1x32xf32, #tpu.memory_space<vmem>>, %arg8: memref<32x128xbf16, #tpu.memory_space<vmem>>, %arg9: memref<1x128xf32, #tpu.memory_space<vmem>>, %arg10: memref<128x32xbf16, #tpu.memory_space<vmem>>, %arg11: memref<1x32xf32, #tpu.memory_space<vmem>>, %arg12: memref<16x32xf32, #tpu.memory_space<vmem>>, %arg13: memref<16x32xf32, #tpu.memory_space<vmem>>) attributes {dimension_semantics = [], scalar_prefetch = 0 : i64, scratch_operands = 1 : i64, tpu.core_type = #tpu.core_type<tc>} {
    %c0 = arith.constant 0 : index
    %c0_0 = arith.constant 0 : index
    %0 = vector.load %arg0[%c0, %c0_0] : memref<16x32xf32, #tpu.memory_space<vmem>>, vector<16x32xf32>
    %c0_1 = arith.constant 0 : index
    %c0_2 = arith.constant 0 : index
    %1 = vector.load %arg4[%c0_1, %c0_2] : memref<1x32xf32, #tpu.memory_space<vmem>>, vector<1x32xf32>
    %c0_3 = arith.constant 0 : index
    %c0_4 = arith.constant 0 : index
    %2 = vector.load %arg5[%c0_3, %c0_4] : memref<1x32xf32, #tpu.memory_space<vmem>>, vector<1x32xf32>
    %cst = arith.constant dense<0.000000e+00> : vector<16xf32>
    %3 = vector.multi_reduction <add>, %0, %cst [1] : vector<16x32xf32> to vector<16xf32>
    %4 = vector.shape_cast %3 : vector<16xf32> to vector<16x1xf32>
    %cst_5 = arith.constant 3.200000e+01 : f32
    %5 = vector.broadcast %cst_5 : f32 to vector<16x1xf32>
    %6 = arith.divf %4, %5 : vector<16x1xf32>
    %7 = vector.broadcast %6 : vector<16x1xf32> to vector<16x32xf32>
    %8 = arith.subf %0, %7 : vector<16x32xf32>
    %9 = arith.mulf %8, %8 : vector<16x32xf32>
    %cst_6 = arith.constant dense<0.000000e+00> : vector<16xf32>
    %10 = vector.multi_reduction <add>, %9, %cst_6 [1] : vector<16x32xf32> to vector<16xf32>
    %11 = vector.shape_cast %10 : vector<16xf32> to vector<16x1xf32>
    %cst_7 = arith.constant 0.0322580636 : f32
    %12 = vector.broadcast %cst_7 : f32 to vector<16x1xf32>
    %13 = arith.mulf %11, %12 : vector<16x1xf32>
    %14 = math.sqrt %13 : vector<16x1xf32>
    %cst_8 = arith.constant 1.000000e-10 : f32
    %15 = vector.broadcast %cst_8 : f32 to vector<16x1xf32>
    %16 = arith.addf %14, %15 : vector<16x1xf32>
    %17 = tpu.reciprocal %16 {approx = true} : vector<16x1xf32> -> vector<16x1xf32>
    %18 = vector.broadcast %17 : vector<16x1xf32> to vector<16x32xf32>
    %19 = arith.mulf %8, %18 : vector<16x32xf32>
    %20 = vector.broadcast %1 : vector<1x32xf32> to vector<16x32xf32>
    %21 = arith.mulf %19, %20 : vector<16x32xf32>
    %22 = vector.broadcast %2 : vector<1x32xf32> to vector<16x32xf32>
    %23 = arith.addf %21, %22 : vector<16x32xf32>
    %24 = arith.truncf %23 : vector<16x32xf32> to vector<16x32xbf16>
    %c0_9 = arith.constant 0 : index
    %c0_10 = arith.constant 0 : index
    %25 = vector.load %arg1[%c0_9, %c0_10] : memref<32x96xbf16, #tpu.memory_space<vmem>>, vector<32x96xbf16>
    %cst_11 = arith.constant dense<0.000000e+00> : vector<16x96xf32>
    %26 = tpu.matmul %24, %25, %cst_11 {dimension_numbers = #tpu.dot_dimension_numbers<[1], [0], [0], [1], [0, 0, 1, 1], [], []>} : vector<16x32xbf16>, vector<32x96xbf16>, vector<16x96xf32> -> vector<16x96xf32>
    %27 = tpu.iota {dimensions = array<i32: 0>} : vector<8x8xi32>
    %28 = tpu.iota {dimensions = array<i32: 1>} : vector<8x8xi32>
    %29 = arith.cmpi sge, %27, %28 : vector<8x8xi32>
    %30 = vector.extract_strided_slice %26 {offsets = [0, 0], sizes = [16, 8], strides = [1, 1]} : vector<16x96xf32> to vector<16x8xf32>
    %31 = vector.shape_cast %30 : vector<16x8xf32> to vector<2x8x8xf32>
    %32 = vector.extract_strided_slice %26 {offsets = [0, 32], sizes = [16, 8], strides = [1, 1]} : vector<16x96xf32> to vector<16x8xf32>
    %33 = vector.shape_cast %32 : vector<16x8xf32> to vector<2x8x8xf32>
    %34 = vector.extract_strided_slice %26 {offsets = [0, 64], sizes = [16, 8], strides = [1, 1]} : vector<16x96xf32> to vector<16x8xf32>
    %35 = vector.shape_cast %34 : vector<16x8xf32> to vector<2x8x8xf32>
    %36 = arith.truncf %31 : vector<2x8x8xf32> to vector<2x8x8xbf16>
    %37 = arith.truncf %33 : vector<2x8x8xf32> to vector<2x8x8xbf16>
    "tpu.trace_start"() <{level = 10 : i32, message = "btd,bsd->bts"}> : () -> ()
    %cst_12 = arith.constant dense<0.000000e+00> : vector<2x8x8xf32>
    %38 = tpu.matmul %36, %37, %cst_12 {dimension_numbers = #tpu.dot_dimension_numbers<[2], [2], [1], [1], [0, 0, 0, 1, 1, 1], [0], [0]>} : vector<2x8x8xbf16>, vector<2x8x8xbf16>, vector<2x8x8xf32> -> vector<2x8x8xf32>
    "tpu.trace_stop"() : () -> ()
    %cst_13 = arith.constant 0.176776692 : f32
    %39 = vector.broadcast %cst_13 : f32 to vector<2x8x8xf32>
    %40 = arith.mulf %38, %39 : vector<2x8x8xf32>
    %cst_14 = arith.constant -1.000000e+30 : f32
    %41 = vector.shape_cast %29 : vector<8x8xi1> to vector<1x8x8xi1>
    %42 = vector.broadcast %41 : vector<1x8x8xi1> to vector<2x8x8xi1>
    %43 = vector.broadcast %cst_14 : f32 to vector<2x8x8xf32>
    %44 = arith.select %42, %40, %43 : vector<2x8x8xi1>, vector<2x8x8xf32>
    %cst_15 = arith.constant dense<0xFF800000> : vector<2x8xf32>
    %45 = vector.multi_reduction <maximumf>, %44, %cst_15 [2] : vector<2x8x8xf32> to vector<2x8xf32>
    %46 = vector.shape_cast %45 : vector<2x8xf32> to vector<2x8x1xf32>
    %47 = vector.broadcast %46 : vector<2x8x1xf32> to vector<2x8x8xf32>
    %48 = arith.subf %44, %47 : vector<2x8x8xf32>
    %49 = math.exp %48 : vector<2x8x8xf32>
    %cst_16 = arith.constant dense<0.000000e+00> : vector<2x8xf32>
    %50 = vector.multi_reduction <add>, %49, %cst_16 [2] : vector<2x8x8xf32> to vector<2x8xf32>
    %51 = vector.shape_cast %50 : vector<2x8xf32> to vector<2x8x1xf32>
    %52 = tpu.reciprocal %51 {approx = true} : vector<2x8x1xf32> -> vector<2x8x1xf32>
    %53 = vector.broadcast %52 : vector<2x8x1xf32> to vector<2x8x8xf32>
    %54 = arith.mulf %49, %53 : vector<2x8x8xf32>
    %55 = arith.truncf %54 : vector<2x8x8xf32> to vector<2x8x8xbf16>
    %56 = arith.truncf %35 : vector<2x8x8xf32> to vector<2x8x8xbf16>
    "tpu.trace_start"() <{level = 10 : i32, message = "bts,bsd->btd"}> : () -> ()
    %cst_17 = arith.constant dense<0.000000e+00> : vector<2x8x8xf32>
    %57 = tpu.matmul %55, %56, %cst_17 {dimension_numbers = #tpu.dot_dimension_numbers<[2], [1], [1], [2], [0, 0, 0, 1, 1, 2], [0], [0]>} : vector<2x8x8xbf16>, vector<2x8x8xbf16>, vector<2x8x8xf32> -> vector<2x8x8xf32>
    "tpu.trace_stop"() : () -> ()
    %58 = vector.shape_cast %57 : vector<2x8x8xf32> to vector<16x8xf32>
    %c0_18 = arith.constant 0 : index
    %c0_19 = arith.constant 0 : index
    %59 = vector.load %arg13[%c0_18, %c0_19] : memref<16x32xf32, #tpu.memory_space<vmem>>, vector<16x8xf32>
    tpu.vector_store %arg13[%c0_18, %c0_19], %58 {strides = array<i32>} : memref<16x32xf32, #tpu.memory_space<vmem>>, vector<16x8xf32>,
    %60 = vector.extract_strided_slice %26 {offsets = [0, 8], sizes = [16, 8], strides = [1, 1]} : vector<16x96xf32> to vector<16x8xf32>
    %61 = vector.shape_cast %60 : vector<16x8xf32> to vector<2x8x8xf32>
    %62 = vector.extract_strided_slice %26 {offsets = [0, 40], sizes = [16, 8], strides = [1, 1]} : vector<16x96xf32> to vector<16x8xf32>
    %63 = vector.shape_cast %62 : vector<16x8xf32> to vector<2x8x8xf32>
    %64 = vector.extract_strided_slice %26 {offsets = [0, 72], sizes = [16, 8], strides = [1, 1]} : vector<16x96xf32> to vector<16x8xf32>
    %65 = vector.shape_cast %64 : vector<16x8xf32> to vector<2x8x8xf32>
    %66 = arith.truncf %61 : vector<2x8x8xf32> to vector<2x8x8xbf16>
    %67 = arith.truncf %63 : vector<2x8x8xf32> to vector<2x8x8xbf16>
    "tpu.trace_start"() <{level = 10 : i32, message = "btd,bsd->bts"}> : () -> ()
    %cst_20 = arith.constant dense<0.000000e+00> : vector<2x8x8xf32>
    %68 = tpu.matmul %66, %67, %cst_20 {dimension_numbers = #tpu.dot_dimension_numbers<[2], [2], [1], [1], [0, 0, 0, 1, 1, 1], [0], [0]>} : vector<2x8x8xbf16>, vector<2x8x8xbf16>, vector<2x8x8xf32> -> vector<2x8x8xf32>
    "tpu.trace_stop"() : () -> ()
    %cst_21 = arith.constant 0.176776692 : f32
    %69 = vector.broadcast %cst_21 : f32 to vector<2x8x8xf32>
    %70 = arith.mulf %68, %69 : vector<2x8x8xf32>
    %cst_22 = arith.constant -1.000000e+30 : f32
    %71 = vector.shape_cast %29 : vector<8x8xi1> to vector<1x8x8xi1>
    %72 = vector.broadcast %71 : vector<1x8x8xi1> to vector<2x8x8xi1>
    %73 = vector.broadcast %cst_22 : f32 to vector<2x8x8xf32>
    %74 = arith.select %72, %70, %73 : vector<2x8x8xi1>, vector<2x8x8xf32>
    %cst_23 = arith.constant dense<0xFF800000> : vector<2x8xf32>
    %75 = vector.multi_reduction <maximumf>, %74, %cst_23 [2] : vector<2x8x8xf32> to vector<2x8xf32>
    %76 = vector.shape_cast %75 : vector<2x8xf32> to vector<2x8x1xf32>
    %77 = vector.broadcast %76 : vector<2x8x1xf32> to vector<2x8x8xf32>
    %78 = arith.subf %74, %77 : vector<2x8x8xf32>
    %79 = math.exp %78 : vector<2x8x8xf32>
    %cst_24 = arith.constant dense<0.000000e+00> : vector<2x8xf32>
    %80 = vector.multi_reduction <add>, %79, %cst_24 [2] : vector<2x8x8xf32> to vector<2x8xf32>
    %81 = vector.shape_cast %80 : vector<2x8xf32> to vector<2x8x1xf32>
    %82 = tpu.reciprocal %81 {approx = true} : vector<2x8x1xf32> -> vector<2x8x1xf32>
    %83 = vector.broadcast %82 : vector<2x8x1xf32> to vector<2x8x8xf32>
    %84 = arith.mulf %79, %83 : vector<2x8x8xf32>
    %85 = arith.truncf %84 : vector<2x8x8xf32> to vector<2x8x8xbf16>
    %86 = arith.truncf %65 : vector<2x8x8xf32> to vector<2x8x8xbf16>
    "tpu.trace_start"() <{level = 10 : i32, message = "bts,bsd->btd"}> : () -> ()
    %cst_25 = arith.constant dense<0.000000e+00> : vector<2x8x8xf32>
    %87 = tpu.matmul %85, %86, %cst_25 {dimension_numbers = #tpu.dot_dimension_numbers<[2], [1], [1], [2], [0, 0, 0, 1, 1, 2], [0], [0]>} : vector<2x8x8xbf16>, vector<2x8x8xbf16>, vector<2x8x8xf32> -> vector<2x8x8xf32>
    "tpu.trace_stop"() : () -> ()
    %88 = vector.shape_cast %87 : vector<2x8x8xf32> to vector<16x8xf32>
    %c0_26 = arith.constant 0 : index
    %c8 = arith.constant 8 : index
    %89 = vector.load %arg13[%c0_26, %c8] : memref<16x32xf32, #tpu.memory_space<vmem>>, vector<16x8xf32>
    tpu.vector_store %arg13[%c0_26, %c8], %88 {strides = array<i32>} : memref<16x32xf32, #tpu.memory_space<vmem>>, vector<16x8xf32>,
    %90 = vector.extract_strided_slice %26 {offsets = [0, 16], sizes = [16, 8], strides = [1, 1]} : vector<16x96xf32> to vector<16x8xf32>
    %91 = vector.shape_cast %90 : vector<16x8xf32> to vector<2x8x8xf32>
    %92 = vector.extract_strided_slice %26 {offsets = [0, 48], sizes = [16, 8], strides = [1, 1]} : vector<16x96xf32> to vector<16x8xf32>
    %93 = vector.shape_cast %92 : vector<16x8xf32> to vector<2x8x8xf32>
    %94 = vector.extract_strided_slice %26 {offsets = [0, 80], sizes = [16, 8], strides = [1, 1]} : vector<16x96xf32> to vector<16x8xf32>
    %95 = vector.shape_cast %94 : vector<16x8xf32> to vector<2x8x8xf32>
    %96 = arith.truncf %91 : vector<2x8x8xf32> to vector<2x8x8xbf16>
    %97 = arith.truncf %93 : vector<2x8x8xf32> to vector<2x8x8xbf16>
    "tpu.trace_start"() <{level = 10 : i32, message = "btd,bsd->bts"}> : () -> ()
    %cst_27 = arith.constant dense<0.000000e+00> : vector<2x8x8xf32>
    %98 = tpu.matmul %96, %97, %cst_27 {dimension_numbers = #tpu.dot_dimension_numbers<[2], [2], [1], [1], [0, 0, 0, 1, 1, 1], [0], [0]>} : vector<2x8x8xbf16>, vector<2x8x8xbf16>, vector<2x8x8xf32> -> vector<2x8x8xf32>
    "tpu.trace_stop"() : () -> ()
    %cst_28 = arith.constant 0.176776692 : f32
    %99 = vector.broadcast %cst_28 : f32 to vector<2x8x8xf32>
    %100 = arith.mulf %98, %99 : vector<2x8x8xf32>
    %cst_29 = arith.constant -1.000000e+30 : f32
    %101 = vector.shape_cast %29 : vector<8x8xi1> to vector<1x8x8xi1>
    %102 = vector.broadcast %101 : vector<1x8x8xi1> to vector<2x8x8xi1>
    %103 = vector.broadcast %cst_29 : f32 to vector<2x8x8xf32>
    %104 = arith.select %102, %100, %103 : vector<2x8x8xi1>, vector<2x8x8xf32>
    %cst_30 = arith.constant dense<0xFF800000> : vector<2x8xf32>
    %105 = vector.multi_reduction <maximumf>, %104, %cst_30 [2] : vector<2x8x8xf32> to vector<2x8xf32>
    %106 = vector.shape_cast %105 : vector<2x8xf32> to vector<2x8x1xf32>
    %107 = vector.broadcast %106 : vector<2x8x1xf32> to vector<2x8x8xf32>
    %108 = arith.subf %104, %107 : vector<2x8x8xf32>
    %109 = math.exp %108 : vector<2x8x8xf32>
    %cst_31 = arith.constant dense<0.000000e+00> : vector<2x8xf32>
    %110 = vector.multi_reduction <add>, %109, %cst_31 [2] : vector<2x8x8xf32> to vector<2x8xf32>
    %111 = vector.shape_cast %110 : vector<2x8xf32> to vector<2x8x1xf32>
    %112 = tpu.reciprocal %111 {approx = true} : vector<2x8x1xf32> -> vector<2x8x1xf32>
    %113 = vector.broadcast %112 : vector<2x8x1xf32> to vector<2x8x8xf32>
    %114 = arith.mulf %109, %113 : vector<2x8x8xf32>
    %115 = arith.truncf %114 : vector<2x8x8xf32> to vector<2x8x8xbf16>
    %116 = arith.truncf %95 : vector<2x8x8xf32> to vector<2x8x8xbf16>
    "tpu.trace_start"() <{level = 10 : i32, message = "bts,bsd->btd"}> : () -> ()
    %cst_32 = arith.constant dense<0.000000e+00> : vector<2x8x8xf32>
    %117 = tpu.matmul %115, %116, %cst_32 {dimension_numbers = #tpu.dot_dimension_numbers<[2], [1], [1], [2], [0, 0, 0, 1, 1, 2], [0], [0]>} : vector<2x8x8xbf16>, vector<2x8x8xbf16>, vector<2x8x8xf32> -> vector<2x8x8xf32>
    "tpu.trace_stop"() : () -> ()
    %118 = vector.shape_cast %117 : vector<2x8x8xf32> to vector<16x8xf32>
    %c0_33 = arith.constant 0 : index
    %c16 = arith.constant 16 : index
    %119 = vector.load %arg13[%c0_33, %c16] : memref<16x32xf32, #tpu.memory_space<vmem>>, vector<16x8xf32>
    tpu.vector_store %arg13[%c0_33, %c16], %118 {strides = array<i32>} : memref<16x32xf32, #tpu.memory_space<vmem>>, vector<16x8xf32>,
    %120 = vector.extract_strided_slice %26 {offsets = [0, 24], sizes = [16, 8], strides = [1, 1]} : vector<16x96xf32> to vector<16x8xf32>
    %121 = vector.shape_cast %120 : vector<16x8xf32> to vector<2x8x8xf32>
    %122 = vector.extract_strided_slice %26 {offsets = [0, 56], sizes = [16, 8], strides = [1, 1]} : vector<16x96xf32> to vector<16x8xf32>
    %123 = vector.shape_cast %122 : vector<16x8xf32> to vector<2x8x8xf32>
    %124 = vector.extract_strided_slice %26 {offsets = [0, 88], sizes = [16, 8], strides = [1, 1]} : vector<16x96xf32> to vector<16x8xf32>
    %125 = vector.shape_cast %124 : vector<16x8xf32> to vector<2x8x8xf32>
    %126 = arith.truncf %121 : vector<2x8x8xf32> to vector<2x8x8xbf16>
    %127 = arith.truncf %123 : vector<2x8x8xf32> to vector<2x8x8xbf16>
    "tpu.trace_start"() <{level = 10 : i32, message = "btd,bsd->bts"}> : () -> ()
    %cst_34 = arith.constant dense<0.000000e+00> : vector<2x8x8xf32>
    %128 = tpu.matmul %126, %127, %cst_34 {dimension_numbers = #tpu.dot_dimension_numbers<[2], [2], [1], [1], [0, 0, 0, 1, 1, 1], [0], [0]>} : vector<2x8x8xbf16>, vector<2x8x8xbf16>, vector<2x8x8xf32> -> vector<2x8x8xf32>
    "tpu.trace_stop"() : () -> ()
    %cst_35 = arith.constant 0.176776692 : f32
    %129 = vector.broadcast %cst_35 : f32 to vector<2x8x8xf32>
    %130 = arith.mulf %128, %129 : vector<2x8x8xf32>
    %cst_36 = arith.constant -1.000000e+30 : f32
    %131 = vector.shape_cast %29 : vector<8x8xi1> to vector<1x8x8xi1>
    %132 = vector.broadcast %131 : vector<1x8x8xi1> to vector<2x8x8xi1>
    %133 = vector.broadcast %cst_36 : f32 to vector<2x8x8xf32>
    %134 = arith.select %132, %130, %133 : vector<2x8x8xi1>, vector<2x8x8xf32>
    %cst_37 = arith.constant dense<0xFF800000> : vector<2x8xf32>
    %135 = vector.multi_reduction <maximumf>, %134, %cst_37 [2] : vector<2x8x8xf32> to vector<2x8xf32>
    %136 = vector.shape_cast %135 : vector<2x8xf32> to vector<2x8x1xf32>
    %137 = vector.broadcast %136 : vector<2x8x1xf32> to vector<2x8x8xf32>
    %138 = arith.subf %134, %137 : vector<2x8x8xf32>
    %139 = math.exp %138 : vector<2x8x8xf32>
    %cst_38 = arith.constant dense<0.000000e+00> : vector<2x8xf32>
    %140 = vector.multi_reduction <add>, %139, %cst_38 [2] : vector<2x8x8xf32> to vector<2x8xf32>
    %141 = vector.shape_cast %140 : vector<2x8xf32> to vector<2x8x1xf32>
    %142 = tpu.reciprocal %141 {approx = true} : vector<2x8x1xf32> -> vector<2x8x1xf32>
    %143 = vector.broadcast %142 : vector<2x8x1xf32> to vector<2x8x8xf32>
    %144 = arith.mulf %139, %143 : vector<2x8x8xf32>
    %145 = arith.truncf %144 : vector<2x8x8xf32> to vector<2x8x8xbf16>
    %146 = arith.truncf %125 : vector<2x8x8xf32> to vector<2x8x8xbf16>
    "tpu.trace_start"() <{level = 10 : i32, message = "bts,bsd->btd"}> : () -> ()
    %cst_39 = arith.constant dense<0.000000e+00> : vector<2x8x8xf32>
    %147 = tpu.matmul %145, %146, %cst_39 {dimension_numbers = #tpu.dot_dimension_numbers<[2], [1], [1], [2], [0, 0, 0, 1, 1, 2], [0], [0]>} : vector<2x8x8xbf16>, vector<2x8x8xbf16>, vector<2x8x8xf32> -> vector<2x8x8xf32>
    "tpu.trace_stop"() : () -> ()
    %148 = vector.shape_cast %147 : vector<2x8x8xf32> to vector<16x8xf32>
    %c0_40 = arith.constant 0 : index
    %c24 = arith.constant 24 : index
    %149 = vector.load %arg13[%c0_40, %c24] : memref<16x32xf32, #tpu.memory_space<vmem>>, vector<16x8xf32>
    tpu.vector_store %arg13[%c0_40, %c24], %148 {strides = array<i32>} : memref<16x32xf32, #tpu.memory_space<vmem>>, vector<16x8xf32>,
    %c0_41 = arith.constant 0 : index
    %c0_42 = arith.constant 0 : index
    %150 = vector.load %arg13[%c0_41, %c0_42] : memref<16x32xf32, #tpu.memory_space<vmem>>, vector<16x32xf32>
    %151 = arith.truncf %150 : vector<16x32xf32> to vector<16x32xbf16>
    %c0_43 = arith.constant 0 : index
    %c0_44 = arith.constant 0 : index
    %152 = vector.load %arg2[%c0_43, %c0_44] : memref<32x32xbf16, #tpu.memory_space<vmem>>, vector<32x32xbf16>
    %cst_45 = arith.constant dense<0.000000e+00> : vector<16x32xf32>
    %153 = tpu.matmul %151, %152, %cst_45 {dimension_numbers = #tpu.dot_dimension_numbers<[1], [0], [0], [1], [0, 0, 1, 1], [], []>} : vector<16x32xbf16>, vector<32x32xbf16>, vector<16x32xf32> -> vector<16x32xf32>
    %c0_46 = arith.constant 0 : index
    %c0_47 = arith.constant 0 : index
    %154 = vector.load %arg3[%c0_46, %c0_47] : memref<1x32xf32, #tpu.memory_space<vmem>>, vector<1x32xf32>
    %155 = vector.broadcast %154 : vector<1x32xf32> to vector<16x32xf32>
    %156 = arith.addf %153, %155 : vector<16x32xf32>
    %157 = arith.addf %0, %156 : vector<16x32xf32>
    %c0_48 = arith.constant 0 : index
    %c0_49 = arith.constant 0 : index
    %158 = vector.load %arg6[%c0_48, %c0_49] : memref<1x32xf32, #tpu.memory_space<vmem>>, vector<1x32xf32>
    %c0_50 = arith.constant 0 : index
    %c0_51 = arith.constant 0 : index
    %159 = vector.load %arg7[%c0_50, %c0_51] : memref<1x32xf32, #tpu.memory_space<vmem>>, vector<1x32xf32>
    %cst_52 = arith.constant dense<0.000000e+00> : vector<16xf32>
    %160 = vector.multi_reduction <add>, %157, %cst_52 [1] : vector<16x32xf32> to vector<16xf32>
    %161 = vector.shape_cast %160 : vector<16xf32> to vector<16x1xf32>
    %cst_53 = arith.constant 3.200000e+01 : f32
    %162 = vector.broadcast %cst_53 : f32 to vector<16x1xf32>
    %163 = arith.divf %161, %162 : vector<16x1xf32>
    %164 = vector.broadcast %163 : vector<16x1xf32> to vector<16x32xf32>
    %165 = arith.subf %157, %164 : vector<16x32xf32>
    %166 = arith.mulf %165, %165 : vector<16x32xf32>
    %cst_54 = arith.constant dense<0.000000e+00> : vector<16xf32>
    %167 = vector.multi_reduction <add>, %166, %cst_54 [1] : vector<16x32xf32> to vector<16xf32>
    %168 = vector.shape_cast %167 : vector<16xf32> to vector<16x1xf32>
    %cst_55 = arith.constant 0.0322580636 : f32
    %169 = vector.broadcast %cst_55 : f32 to vector<16x1xf32>
    %170 = arith.mulf %168, %169 : vector<16x1xf32>
    %171 = math.sqrt %170 : vector<16x1xf32>
    %cst_56 = arith.constant 1.000000e-10 : f32
    %172 = vector.broadcast %cst_56 : f32 to vector<16x1xf32>
    %173 = arith.addf %171, %172 : vector<16x1xf32>
    %174 = tpu.reciprocal %173 {approx = true} : vector<16x1xf32> -> vector<16x1xf32>
    %175 = vector.broadcast %174 : vector<16x1xf32> to vector<16x32xf32>
    %176 = arith.mulf %165, %175 : vector<16x32xf32>
    %177 = vector.broadcast %158 : vector<1x32xf32> to vector<16x32xf32>
    %178 = arith.mulf %176, %177 : vector<16x32xf32>
    %179 = vector.broadcast %159 : vector<1x32xf32> to vector<16x32xf32>
    %180 = arith.addf %178, %179 : vector<16x32xf32>
    %181 = arith.truncf %180 : vector<16x32xf32> to vector<16x32xbf16>
    %c0_57 = arith.constant 0 : index
    %c0_58 = arith.constant 0 : index
    %182 = vector.load %arg8[%c0_57, %c0_58] : memref<32x128xbf16, #tpu.memory_space<vmem>>, vector<32x128xbf16>
    %cst_59 = arith.constant dense<0.000000e+00> : vector<16x128xf32>
    %183 = tpu.matmul %181, %182, %cst_59 {dimension_numbers = #tpu.dot_dimension_numbers<[1], [0], [0], [1], [0, 0, 1, 1], [], []>} : vector<16x32xbf16>, vector<32x128xbf16>, vector<16x128xf32> -> vector<16x128xf32>
    %c0_60 = arith.constant 0 : index
    %c0_61 = arith.constant 0 : index
    %184 = vector.load %arg9[%c0_60, %c0_61] : memref<1x128xf32, #tpu.memory_space<vmem>>, vector<1x128xf32>
    %185 = vector.broadcast %184 : vector<1x128xf32> to vector<16x128xf32>
    %186 = arith.addf %183, %185 : vector<16x128xf32>
    %cst_62 = arith.constant 5.000000e-01 : f32
    %187 = vector.broadcast %cst_62 : f32 to vector<16x128xf32>
    %188 = arith.mulf %187, %186 : vector<16x128xf32>
    %cst_63 = arith.constant 4.471500e-02 : f32
    %189 = vector.broadcast %cst_63 : f32 to vector<16x128xf32>
    %190 = arith.mulf %189, %186 : vector<16x128xf32>
    %191 = arith.mulf %190, %186 : vector<16x128xf32>
    %192 = arith.mulf %191, %186 : vector<16x128xf32>
    %193 = arith.addf %186, %192 : vector<16x128xf32>
    %cst_64 = arith.constant 0.797884583 : f32
    %194 = vector.broadcast %cst_64 : f32 to vector<16x128xf32>
    %195 = arith.mulf %194, %193 : vector<16x128xf32>
    %196 = math.tanh %195 : vector<16x128xf32>
    %cst_65 = arith.constant 1.000000e+00 : f32
    %197 = vector.broadcast %cst_65 : f32 to vector<16x128xf32>
    %198 = arith.addf %197, %196 : vector<16x128xf32>
    %199 = arith.mulf %188, %198 : vector<16x128xf32>
    %200 = arith.truncf %199 : vector<16x128xf32> to vector<16x128xbf16>
    %c0_66 = arith.constant 0 : index
    %c0_67 = arith.constant 0 : index
    %201 = vector.load %arg10[%c0_66, %c0_67] : memref<128x32xbf16, #tpu.memory_space<vmem>>, vector<128x32xbf16>
    %cst_68 = arith.constant dense<0.000000e+00> : vector<16x32xf32>
    %202 = tpu.matmul %200, %201, %cst_68 {dimension_numbers = #tpu.dot_dimension_numbers<[1], [0], [0], [1], [0, 0, 1, 1], [], []>} : vector<16x128xbf16>, vector<128x32xbf16>, vector<16x32xf32> -> vector<16x32xf32>
    %c0_69 = arith.constant 0 : index
    %c0_70 = arith.constant 0 : index
    %203 = vector.load %arg11[%c0_69, %c0_70] : memref<1x32xf32, #tpu.memory_space<vmem>>, vector<1x32xf32>
    %204 = vector.broadcast %203 : vector<1x32xf32> to vector<16x32xf32>
    %205 = arith.addf %202, %204 : vector<16x32xf32>
    %206 = arith.addf %157, %205 : vector<16x32xf32>
    %c0_71 = arith.constant 0 : index
    %c0_72 = arith.constant 0 : index
    %207 = vector.load %arg12[%c0_71, %c0_72] : memref<16x32xf32, #tpu.memory_space<vmem>>, vector<16x32xf32>
    tpu.vector_store %arg12[%c0_71, %c0_72], %206 {strides = array<i32>} : memref<16x32xf32, #tpu.memory_space<vmem>>, vector<16x32xf32>,
    return
  }
}

</mosaic_0001>

<llo_original>
// kernel: tpu_custom_call.1
$region0: #{tpu_custom_call.1}
  #allocation0 [shape = 'u32[]', space=smem, size = 0x4, offset = 0x4, fixed_abs, tag = 'smem constant byte address 0x4 - core index']
  #allocation1 [shape = 'u32[144,128]{1,0:T(1,128)}', space=vmem, size = 0x12000, scoped, tag = 'internal scratch']
  #allocation2 [shape = 'f32[16,32]{1,0:T(8,128)}', space=vmem, size = 0x2000, scoped, tag = 'scratch operand']
  %s0 = inlined_call_operand.vmem [shape: f32[16,32], index: 0, kind: input, shape index: {}]
  %s1 = inlined_call_operand.vmem [shape: bf16[32,96], index: 1, kind: input, shape index: {}]
  %s2 = inlined_call_operand.vmem [shape: bf16[32,32], index: 2, kind: input, shape index: {}]
  %s3 = inlined_call_operand.vmem [shape: f32[1,32], index: 3, kind: input, shape index: {}]
  %s4 = inlined_call_operand.vmem [shape: f32[1,32], index: 4, kind: input, shape index: {}]
  %s5 = inlined_call_operand.vmem [shape: f32[1,32], index: 5, kind: input, shape index: {}]
  %s6 = inlined_call_operand.vmem [shape: f32[1,32], index: 6, kind: input, shape index: {}]
  %s7 = inlined_call_operand.vmem [shape: f32[1,32], index: 7, kind: input, shape index: {}]
  %s8 = inlined_call_operand.vmem [shape: bf16[32,128], index: 8, kind: input, shape index: {}]
  %s9 = inlined_call_operand.vmem [shape: f32[1,128], index: 9, kind: input, shape index: {}]
  %s10 = inlined_call_operand.vmem [shape: bf16[128,32], index: 10, kind: input, shape index: {}]
  %s11 = inlined_call_operand.vmem [shape: f32[1,32], index: 11, kind: input, shape index: {}]
  %s12 = inlined_call_operand.hbm [shape: f32[16,32], index: 12, kind: output, shape index: {}]
  %s13 = sld [smem:[#allocation0]]
  $region58: #{tpu_custom_call.1} parent=0
    _
  %s15 = ssub.s32 1, %s13
  %s16 = scalar_select 0, %s15, %s13
  $region1: #{tpu_custom_call.1} parent=0
    #allocation3 [shape = 'u8[8192]{0}', space=vmem, size = 0x2000, scoped, tag = 'output window, operand 0, single buffered']
    #allocation4 [shape = 's32[1]{0}', space=sflag, size = 0x4, scoped, tag = 'scoped memory for tpu_custom_call.1']
    %17 = vsyncpa [#allocation4], 0
    // Predicated region
    $region2: #{tpu_custom_call.1} parent=1 // pred_check
      _
    $region3: #{tpu_custom_call.1} parent=1 // pred_check_branch
      %19 = sbr.rel (0) target = $region5
    $region4: #{tpu_custom_call.1} parent=1 // pred_region
      _
    $region5: #{tpu_custom_call.1} parent=1 // pred_fallthru
      _
    // Predicated region
    $region6: #{tpu_custom_call.1} parent=1 // pred_check
      _
    $region7: #{tpu_custom_call.1} parent=1 // pred_check_branch
      %21 = sbr.rel (0) target = $region9
    $region8: #{tpu_custom_call.1} parent=1 // pred_region
      _
    $region9: #{tpu_custom_call.1} parent=1 // pred_fallthru
      _
    // Predicated region
    $region10: #{tpu_custom_call.1} parent=1 // pred_check
      _
    $region11: #{tpu_custom_call.1} parent=1 // pred_check_branch
      %23 = sbr.rel (0) target = $region13
    $region12: #{tpu_custom_call.1} parent=1 // pred_region
      _
    $region13: #{tpu_custom_call.1} parent=1 // pred_fallthru
      _
    // Predicated region
    $region14: #{tpu_custom_call.1} parent=1 // pred_check
      _
    $region15: #{tpu_custom_call.1} parent=1 // pred_check_branch
      %25 = sbr.rel (0) target = $region17
    $region16: #{tpu_custom_call.1} parent=1 // pred_region
      _
    $region17: #{tpu_custom_call.1} parent=1 // pred_fallthru
      _
    // Predicated region
    $region18: #{tpu_custom_call.1} parent=1 // pred_check
      _
    $region19: #{tpu_custom_call.1} parent=1 // pred_check_branch
      %27 = sbr.rel (0) target = $region21
    $region20: #{tpu_custom_call.1} parent=1 // pred_region
      _
    $region21: #{tpu_custom_call.1} parent=1 // pred_fallthru
      _
    // Predicated region
    $region22: #{tpu_custom_call.1} parent=1 // pred_check
      _
    $region23: #{tpu_custom_call.1} parent=1 // pred_check_branch
      %29 = sbr.rel (0) target = $region25
    $region24: #{tpu_custom_call.1} parent=1 // pred_region
      _
    $region25: #{tpu_custom_call.1} parent=1 // pred_fallthru
      _
    // Predicated region
    $region26: #{tpu_custom_call.1} parent=1 // pred_check
      _
    $region27: #{tpu_custom_call.1} parent=1 // pred_check_branch
      %31 = sbr.rel (0) target = $region29
    $region28: #{tpu_custom_call.1} parent=1 // pred_region
      _
    $region29: #{tpu_custom_call.1} parent=1 // pred_fallthru
      _
    // Predicated region
    $region30: #{tpu_custom_call.1} parent=1 // pred_check
      _
    $region31: #{tpu_custom_call.1} parent=1 // pred_check_branch
      %33 = sbr.rel (0) target = $region33
    $region32: #{tpu_custom_call.1} parent=1 // pred_region
      _
    $region33: #{tpu_custom_call.1} parent=1 // pred_fallthru
      _
    // Predicated region
    $region34: #{tpu_custom_call.1} parent=1 // pred_check
      _
    $region35: #{tpu_custom_call.1} parent=1 // pred_check_branch
      %35 = sbr.rel (0) target = $region37
    $region36: #{tpu_custom_call.1} parent=1 // pred_region
      _
    $region37: #{tpu_custom_call.1} parent=1 // pred_fallthru
      _
    // Predicated region
    $region38: #{tpu_custom_call.1} parent=1 // pred_check
      _
    $region39: #{tpu_custom_call.1} parent=1 // pred_check_branch
      %37 = sbr.rel (0) target = $region41
    $region40: #{tpu_custom_call.1} parent=1 // pred_region
      _
    $region41: #{tpu_custom_call.1} parent=1 // pred_fallthru
      _
    // Predicated region
    $region42: #{tpu_custom_call.1} parent=1 // pred_check
      _
    $region43: #{tpu_custom_call.1} parent=1 // pred_check_branch
      %39 = sbr.rel (0) target = $region45
    $region44: #{tpu_custom_call.1} parent=1 // pred_region
      _
    $region45: #{tpu_custom_call.1} parent=1 // pred_fallthru
      _
    // Predicated region
    $region46: #{tpu_custom_call.1} parent=1 // pred_check
      _
    $region47: #{tpu_custom_call.1} parent=1 // pred_check_branch
      %41 = sbr.rel (0) target = $region49
    $region48: #{tpu_custom_call.1} parent=1 // pred_region
      _
    $region49: #{tpu_custom_call.1} parent=1 // pred_fallthru
      _
    %v43 = vld [vmem:[%s0] sm:$0xff]
    %v44 = vld [vmem:[%s0 + $0x8] sm:$0xff]
    %v45 = vld [vmem:[%s4] sm:$0x1]
    %v46 = vld [vmem:[%s5] sm:$0x1]
    %vm47 = vcmask 261120
    %v48 = vsel %vm47, %v43, 0.0
    %49 = vadd.xlane.f32.xlu0 %v48
    %v50 = vpop.xlane.xlu0 %49
    %v51 = vsel %vm47, %v44, 0.0
    %52 = vadd.xlane.f32.xlu0 %v51
    %v53 = vpop.xlane.xlu0 %52
    %v54 = vrcp.pop 32.0
    %v55 = vmul.f32 %v50, %v54
    %v56 = vmul.f32 %v53, %v54
    %v57 = vsub.f32 %v43, %v55
    %v58 = vsub.f32 %v44, %v56
    %v59 = vmul.f32 %v57, %v57
    %v60 = vmul.f32 %v58, %v58
    %v61 = vsel %vm47, %v59, 0.0
    %62 = vadd.xlane.f32.xlu0 %v61
    %v63 = vpop.xlane.xlu0 %62
    %v64 = vsel %vm47, %v60, 0.0
    %65 = vadd.xlane.f32.xlu0 %v64
    %v66 = vpop.xlane.xlu0 %65
    %v67 = vmul.f32 %v63, 0.032258064
    %v68 = vmul.f32 %v66, 0.032258064
    %v69 = vrsqrt.pop %v67
    %v70 = vmul.f32 %v67, %v69
    %vm71 = vcmp.eq.f32.partialorder %v67, inf
    %v72 = vsel %vm71, %v67, %v70
    %vm73 = vcmp.eq.f32.partialorder %v67, 0.0
    %v74 = vand.u32 %v67, 2147483648
    %v75 = vsel %vm73, %v74, %v72
    %v76 = vrsqrt.pop %v68
    %v77 = vmul.f32 %v68, %v76
    %vm78 = vcmp.eq.f32.partialorder %v68, inf
    %v79 = vsel %vm78, %v68, %v77
    %vm80 = vcmp.eq.f32.partialorder %v68, 0.0
    %v81 = vand.u32 %v68, 2147483648
    %v82 = vsel %vm80, %v81, %v79
    %v83 = vadd.f32 %v75, 1e-10
    %v84 = vadd.f32 %v82, 1e-10
    %v85 = vrcp.pop %v83
    %v86 = vrcp.pop %v84
    %v87 = vmul.f32 %v57, %v85
    %v88 = vmul.f32 %v58, %v86
    %v90 = vlaneseq
    %v91 = vshrl.u32 %v90, 7
    %v92 = vsub.s32 0, %v91
    %v93 = vrot.slane %v45, %v92
    %v95 = vmul.f32 %v87, %v93
    %v96 = vmul.f32 %v88, %v93
    %v98 = vlaneseq
    %v99 = vshrl.u32 %v98, 7
    %v100 = vsub.s32 0, %v99
    %v101 = vrot.slane %v46, %v100
    %v103 = vadd.f32 %v95, %v101
    %v104 = vadd.f32 %v96, %v101
    %v105 = vpack.c.bf16 %v104, %v103
    %v106 = vld [vmem:[%s1] sm:$0xf]
    %v107 = vld [vmem:[%s1 + $0x4] sm:$0xf]
    %v108 = vld [vmem:[%s1 + $0x8] sm:$0xf]
    %v109 = vld [vmem:[%s1 + $0xc] sm:$0xf]
    %v114 = vunpack.c.l.b16 %v106
    %v115 = vunpack.c.l.b16 %v107
    %v116 = vunpack.c.l.b16 %v108
    %v117 = vunpack.c.l.b16 %v109
    %v118 = vpack.c.b16 %v115, %v114
    %v119 = vpack.c.b16 %v117, %v116
    %v123 = vsel %vm47, %v105, 0
    %125 = vmatprep.subr.bf16.mxu0 0
    %126 = vmatpush1.bf16.msra.mxu0 0
    %127 = vmatprep.subr.bf16.mxu0 0
    %128 = vmatpush1.bf16.msra.mxu0 0
    %129 = vmatprep.subr.bf16.mxu0 0
    %130 = vmatpush1.bf16.msra.mxu0 0
    %131 = vmatprep.subr.bf16.mxu0 0
    %132 = vmatpush1.bf16.msra.mxu0 0
    %133 = vmatprep.subr.bf16.mxu0 0
    %134 = vmatpush1.bf16.msra.mxu0 0
    %135 = vmatprep.subr.bf16.mxu0 0
    %136 = vmatpush1.bf16.msra.mxu0 0
    %137 = vmatprep.subr.bf16.mxu0 0
    %138 = vmatpush1.bf16.msra.mxu0 %v119
    %139 = vmatprep.subr.bf16.mxu0 0
    %140 = vmatpush1.bf16.msra.mxu0 %v118
    %141 = vmatprep.subr.bf16.mxu0 0
    %142 = vmatpush2.bf16.msra.mxu0 0
    %143 = vmatprep.subr.bf16.mxu0 0
    %144 = vmatpush2.bf16.msra.mxu0 0
    %145 = vmatprep.subr.bf16.mxu0 0
    %146 = vmatpush2.bf16.msra.mxu0 0
    %147 = vmatprep.subr.bf16.mxu0 0
    %148 = vmatpush2.bf16.msra.mxu0 0
    %149 = vmatprep.subr.bf16.mxu0 0
    %150 = vmatpush2.bf16.msra.mxu0 0
    %151 = vmatprep.subr.bf16.mxu0 0
    %152 = vmatpush2.bf16.msra.mxu0 0
    %153 = vmatprep.subr.bf16.mxu0 0
    %154 = vmatpush2.bf16.msra.mxu0 0
    %155 = vmatprep.subr.bf16.mxu0 0
    %156 = vmatpush2.bf16.msra.mxu0 0
    %157 = vmatprep.mubr.bf16.mxu0 0
    %158 = vmatmul.mubr.bf16.gmra.mxu0 %v123
    %v159 = vpop.f32.mrf.mxu0
    %v160 = vadd.f32 0.0, %v159
    %v161 = vpop.f32.mrf.mxu0
    %v162 = vpop.f32.mrf.mxu0
    %v163 = vadd.f32 0.0, %v162
    %v164 = vpop.f32.mrf.mxu0
    %165 = vdwg.mxu0
    %v166 = vlaneseq
    %v167 = vshrl.u32 %v166, 7
    %v168 = vlaneseq
    %v169 = vand.u32 %v168, 127
    %vm170 = vcmp.ge.s32.totalorder %v167, %v169
    %v171 = vpack.c.bf16 %v160, %v160
    %v172 = vpack.c.bf16 %v163, %v163
    %174 = vrot.lane.b32.xlu0 %v171, 96
    %v175 = vpop.permute.xlu0 %174
    %vm176 = vcmask 64512
    %v178 = vsel %vm176, %v171, 0
    %v181 = vsel %vm176, %v175, 0
    %183 = vmatprep.subr.bf16.mxu0 0
    %184 = vmatpush1.bf16.xpose.msra.mxu0 0
    %185 = vmatprep.subr.bf16.mxu0 0
    %186 = vmatpush1.bf16.xpose.msra.mxu0 0
    %187 = vmatprep.subr.bf16.mxu0 0
    %188 = vmatpush1.bf16.xpose.msra.mxu0 0
    %189 = vmatprep.subr.bf16.mxu0 0
    %190 = vmatpush1.bf16.xpose.msra.mxu0 0
    %191 = vmatprep.subr.bf16.mxu0 0
    %192 = vmatpush1.bf16.xpose.msra.mxu0 0
    %193 = vmatprep.subr.bf16.mxu0 0
    %194 = vmatpush1.bf16.xpose.msra.mxu0 0
    %195 = vmatprep.subr.bf16.mxu0 0
    %196 = vmatpush1.bf16.xpose.msra.mxu0 0
    %197 = vmatprep.subr.bf16.mxu0 0
    %198 = vmatpush1.bf16.xpose.msra.mxu0 %v181
    %199 = vmatprep.subr.bf16.mxu0 0
    %200 = vmatpush2.bf16.xpose.msra.mxu0 0
    %201 = vmatprep.subr.bf16.mxu0 0
    %202 = vmatpush2.bf16.xpose.msra.mxu0 0
    %203 = vmatprep.subr.bf16.mxu0 0
    %204 = vmatpush2.bf16.xpose.msra.mxu0 0
    %205 = vmatprep.subr.bf16.mxu0 0
    %206 = vmatpush2.bf16.xpose.msra.mxu0 0
    %207 = vmatprep.subr.bf16.mxu0 0
    %208 = vmatpush2.bf16.xpose.msra.mxu0 0
    %209 = vmatprep.subr.bf16.mxu0 0
    %210 = vmatpush2.bf16.xpose.msra.mxu0 0
    %211 = vmatprep.subr.bf16.mxu0 0
    %212 = vmatpush2.bf16.xpose.msra.mxu0 0
    %213 = vmatprep.subr.bf16.mxu0 0
    %214 = vmatpush2.bf16.xpose.msra.mxu0 0
    %215 = vmatprep.mubr.bf16.mxu0 0
    %216 = vmatmul.mubr.bf16.gmra.mxu0 %v178
    %v217 = vpop.f32.mrf.mxu0
    %v218 = vadd.f32 0.0, %v217
    %v219 = vpop.f32.mrf.mxu0
    %v220 = vpop.f32.mrf.mxu0
    %v221 = vpop.f32.mrf.mxu0
    %222 = vdwg.mxu0
    %224 = vrot.lane.b32.xlu0 %v172, 96
    %v225 = vpop.permute.xlu0 %224
    %v227 = vsel %vm176, %v172, 0
    %v230 = vsel %vm176, %v225, 0
    %232 = vmatprep.subr.bf16.mxu0 0
    %233 = vmatpush1.bf16.xpose.msra.mxu0 0
    %234 = vmatprep.subr.bf16.mxu0 0
    %235 = vmatpush1.bf16.xpose.msra.mxu0 0
    %236 = vmatprep.subr.bf16.mxu0 0
    %237 = vmatpush1.bf16.xpose.msra.mxu0 0
    %238 = vmatprep.subr.bf16.mxu0 0
    %239 = vmatpush1.bf16.xpose.msra.mxu0 0
    %240 = vmatprep.subr.bf16.mxu0 0
    %241 = vmatpush1.bf16.xpose.msra.mxu0 0
    %242 = vmatprep.subr.bf16.mxu0 0
    %243 = vmatpush1.bf16.xpose.msra.mxu0 0
    %244 = vmatprep.subr.bf16.mxu0 0
    %245 = vmatpush1.bf16.xpose.msra.mxu0 0
    %246 = vmatprep.subr.bf16.mxu0 0
    %247 = vmatpush1.bf16.xpose.msra.mxu0 %v230
    %248 = vmatprep.subr.bf16.mxu0 0
    %249 = vmatpush2.bf16.xpose.msra.mxu0 0
    %250 = vmatprep.subr.bf16.mxu0 0
    %251 = vmatpush2.bf16.xpose.msra.mxu0 0
    %252 = vmatprep.subr.bf16.mxu0 0
    %253 = vmatpush2.bf16.xpose.msra.mxu0 0
    %254 = vmatprep.subr.bf16.mxu0 0
    %255 = vmatpush2.bf16.xpose.msra.mxu0 0
    %256 = vmatprep.subr.bf16.mxu0 0
    %257 = vmatpush2.bf16.xpose.msra.mxu0 0
    %258 = vmatprep.subr.bf16.mxu0 0
    %259 = vmatpush2.bf16.xpose.msra.mxu0 0
    %260 = vmatprep.subr.bf16.mxu0 0
    %261 = vmatpush2.bf16.xpose.msra.mxu0 0
    %262 = vmatprep.subr.bf16.mxu0 0
    %263 = vmatpush2.bf16.xpose.msra.mxu0 0
    %264 = vmatprep.mubr.bf16.mxu0 0
    %265 = vmatmul.mubr.bf16.gmra.mxu0 %v227
    %v266 = vpop.f32.mrf.mxu0
    %v267 = vadd.f32 0.0, %v266
    %v268 = vpop.f32.mrf.mxu0
    %v269 = vpop.f32.mrf.mxu0
    %v270 = vpop.f32.mrf.mxu0
    %271 = vdwg.mxu0
    %v272 = vmul.f32 %v218, 0.17677669
    %v273 = vmul.f32 %v267, 0.17677669
    %v274 = vsel %vm170, 1, 0
    %vm275 = vcmp.eq.s32.totalorder %v274, 1
    %v276 = vsel %vm275, %v272, -1e+30
    %v277 = vsel %vm275, %v273, -1e+30
    %v278 = vsel %vm176, %v276, -inf
    %279 = vmax.xlane.f32.xlu0 %v278
    %v280 = vpop.xlane.xlu0 %279
    %v281 = vsel %vm176, %v277, -inf
    %282 = vmax.xlane.f32.xlu0 %v281
    %v283 = vpop.xlane.xlu0 %282
    %v284 = vsub.f32 %v276, %v280
    %v285 = vsub.f32 %v277, %v283
    %v286 = vmul.f32 %v284, 1.442695
    %v287 = vpow.pop %v286
    %v288 = vmul.f32 %v285, 1.442695
    %v289 = vpow.pop %v288
    %v290 = vsel %vm176, %v287, 0.0
    %291 = vadd.xlane.f32.xlu0 %v290
    %v292 = vpop.xlane.xlu0 %291
    %v293 = vsel %vm176, %v289, 0.0
    %294 = vadd.xlane.f32.xlu0 %v293
    %v295 = vpop.xlane.xlu0 %294
    %v296 = vrcp.pop %v292
    %v297 = vrcp.pop %v295
    %v298 = vmul.f32 %v287, %v296
    %v299 = vmul.f32 %v289, %v297
    %v300 = vpack.c.bf16 %v298, %v298
    %v301 = vpack.c.bf16 %v299, %v299
    %302 = vrot.lane.b32.xlu0 %v171, 64
    %v303 = vpop.permute.xlu0 %302
    %v305 = vsel %vm176, %v300, 0
    %vm307 = vcmask 1043456
    %v309 = vsel %vm307, %v303, 0
    %311 = vmatprep.subr.bf16.mxu0 0
    %312 = vmatpush1.bf16.msra.mxu0 0
    %313 = vmatprep.subr.bf16.mxu0 0
    %314 = vmatpush1.bf16.msra.mxu0 0
    %315 = vmatprep.subr.bf16.mxu0 0
    %316 = vmatpush1.bf16.msra.mxu0 0
    %317 = vmatprep.subr.bf16.mxu0 0
    %318 = vmatpush1.bf16.msra.mxu0 0
    %319 = vmatprep.subr.bf16.mxu0 0
    %320 = vmatpush1.bf16.msra.mxu0 0
    %321 = vmatprep.subr.bf16.mxu0 0
    %322 = vmatpush1.bf16.msra.mxu0 0
    %323 = vmatprep.subr.bf16.mxu0 0
    %324 = vmatpush1.bf16.msra.mxu0 0
    %325 = vmatprep.subr.bf16.mxu0 0
    %326 = vmatpush1.bf16.msra.mxu0 %v309
    %327 = vmatprep.subr.bf16.mxu0 0
    %328 = vmatpush2.bf16.msra.mxu0 0
    %329 = vmatprep.subr.bf16.mxu0 0
    %330 = vmatpush2.bf16.msra.mxu0 0
    %331 = vmatprep.subr.bf16.mxu0 0
    %332 = vmatpush2.bf16.msra.mxu0 0
    %333 = vmatprep.subr.bf16.mxu0 0
    %334 = vmatpush2.bf16.msra.mxu0 0
    %335 = vmatprep.subr.bf16.mxu0 0
    %336 = vmatpush2.bf16.msra.mxu0 0
    %337 = vmatprep.subr.bf16.mxu0 0
    %338 = vmatpush2.bf16.msra.mxu0 0
    %339 = vmatprep.subr.bf16.mxu0 0
    %340 = vmatpush2.bf16.msra.mxu0 0
    %341 = vmatprep.subr.bf16.mxu0 0
    %342 = vmatpush2.bf16.msra.mxu0 0
    %343 = vmatprep.mubr.bf16.mxu0 0
    %344 = vmatmul.mubr.bf16.gmra.mxu0 %v305
    %v345 = vpop.f32.mrf.mxu0
    %v346 = vadd.f32 0.0, %v345
    %v347 = vpop.f32.mrf.mxu0
    %v348 = vpop.f32.mrf.mxu0
    %v349 = vpop.f32.mrf.mxu0
    %350 = vdwg.mxu0
    %351 = vrot.lane.b32.xlu0 %v172, 64
    %v352 = vpop.permute.xlu0 %351
    %v354 = vsel %vm176, %v301, 0
    %v357 = vsel %vm307, %v352, 0
    %359 = vmatprep.subr.bf16.mxu0 0
    %360 = vmatpush1.bf16.msra.mxu0 0
    %361 = vmatprep.subr.bf16.mxu0 0
    %362 = vmatpush1.bf16.msra.mxu0 0
    %363 = vmatprep.subr.bf16.mxu0 0
    %364 = vmatpush1.bf16.msra.mxu0 0
    %365 = vmatprep.subr.bf16.mxu0 0
    %366 = vmatpush1.bf16.msra.mxu0 0
    %367 = vmatprep.subr.bf16.mxu0 0
    %368 = vmatpush1.bf16.msra.mxu0 0
    %369 = vmatprep.subr.bf16.mxu0 0
    %370 = vmatpush1.bf16.msra.mxu0 0
    %371 = vmatprep.subr.bf16.mxu0 0
    %372 = vmatpush1.bf16.msra.mxu0 0
    %373 = vmatprep.subr.bf16.mxu0 0
    %374 = vmatpush1.bf16.msra.mxu0 %v357
    %375 = vmatprep.subr.bf16.mxu0 0
    %376 = vmatpush2.bf16.msra.mxu0 0
    %377 = vmatprep.subr.bf16.mxu0 0
    %378 = vmatpush2.bf16.msra.mxu0 0
    %379 = vmatprep.subr.bf16.mxu0 0
    %380 = vmatpush2.bf16.msra.mxu0 0
    %381 = vmatprep.subr.bf16.mxu0 0
    %382 = vmatpush2.bf16.msra.mxu0 0
    %383 = vmatprep.subr.bf16.mxu0 0
    %384 = vmatpush2.bf16.msra.mxu0 0
    %385 = vmatprep.subr.bf16.mxu0 0
    %386 = vmatpush2.bf16.msra.mxu0 0
    %387 = vmatprep.subr.bf16.mxu0 0
    %388 = vmatpush2.bf16.msra.mxu0 0
    %389 = vmatprep.subr.bf16.mxu0 0
    %390 = vmatpush2.bf16.msra.mxu0 0
    %391 = vmatprep.mubr.bf16.mxu0 0
    %392 = vmatmul.mubr.bf16.gmra.mxu0 %v354
    %v393 = vpop.f32.mrf.mxu0
    %v394 = vadd.f32 0.0, %v393
    %v395 = vpop.f32.mrf.mxu0
    %v396 = vpop.f32.mrf.mxu0
    %v397 = vpop.f32.mrf.mxu0
    %398 = vdwg.mxu0
    %399 = vst.msk [vmem:[#allocation2] sm:$0xff] %vm176, %v346
    %400 = vst.msk [vmem:[#allocation2 + $0x8] sm:$0xff] %vm176, %v394
    %401 = vrot.lane.b32.xlu0 %v171, 120
    %v402 = vpop.permute.xlu0 %401
    %403 = vrot.lane.b32.xlu0 %v171, 88
    %v404 = vpop.permute.xlu0 %403
    %v406 = vsel %vm176, %v402, 0
    %v409 = vsel %vm176, %v404, 0
    %411 = vmatprep.subr.bf16.mxu0 0
    %412 = vmatpush1.bf16.xpose.msra.mxu0 0
    %413 = vmatprep.subr.bf16.mxu0 0
    %414 = vmatpush1.bf16.xpose.msra.mxu0 0
    %415 = vmatprep.subr.bf16.mxu0 0
    %416 = vmatpush1.bf16.xpose.msra.mxu0 0
    %417 = vmatprep.subr.bf16.mxu0 0
    %418 = vmatpush1.bf16.xpose.msra.mxu0 0
    %419 = vmatprep.subr.bf16.mxu0 0
    %420 = vmatpush1.bf16.xpose.msra.mxu0 0
    %421 = vmatprep.subr.bf16.mxu0 0
    %422 = vmatpush1.bf16.xpose.msra.mxu0 0
    %423 = vmatprep.subr.bf16.mxu0 0
    %424 = vmatpush1.bf16.xpose.msra.mxu0 0
    %425 = vmatprep.subr.bf16.mxu0 0
    %426 = vmatpush1.bf16.xpose.msra.mxu0 %v409
    %427 = vmatprep.subr.bf16.mxu0 0
    %428 = vmatpush2.bf16.xpose.msra.mxu0 0
    %429 = vmatprep.subr.bf16.mxu0 0
    %430 = vmatpush2.bf16.xpose.msra.mxu0 0
    %431 = vmatprep.subr.bf16.mxu0 0
    %432 = vmatpush2.bf16.xpose.msra.mxu0 0
    %433 = vmatprep.subr.bf16.mxu0 0
    %434 = vmatpush2.bf16.xpose.msra.mxu0 0
    %435 = vmatprep.subr.bf16.mxu0 0
    %436 = vmatpush2.bf16.xpose.msra.mxu0 0
    %437 = vmatprep.subr.bf16.mxu0 0
    %438 = vmatpush2.bf16.xpose.msra.mxu0 0
    %439 = vmatprep.subr.bf16.mxu0 0
    %440 = vmatpush2.bf16.xpose.msra.mxu0 0
    %441 = vmatprep.subr.bf16.mxu0 0
    %442 = vmatpush2.bf16.xpose.msra.mxu0 0
    %443 = vmatprep.mubr.bf16.mxu0 0
    %444 = vmatmul.mubr.bf16.gmra.mxu0 %v406
    %v445 = vpop.f32.mrf.mxu0
    %v446 = vadd.f32 0.0, %v445
    %v447 = vpop.f32.mrf.mxu0
    %v448 = vpop.f32.mrf.mxu0
    %v449 = vpop.f32.mrf.mxu0
    %450 = vdwg.mxu0
    %451 = vrot.lane.b32.xlu0 %v172, 120
    %v452 = vpop.permute.xlu0 %451
    %453 = vrot.lane.b32.xlu0 %v172, 88
    %v454 = vpop.permute.xlu0 %453
    %v456 = vsel %vm176, %v452, 0
    %v459 = vsel %vm176, %v454, 0
    %461 = vmatprep.subr.bf16.mxu0 0
    %462 = vmatpush1.bf16.xpose.msra.mxu0 0
    %463 = vmatprep.subr.bf16.mxu0 0
    %464 = vmatpush1.bf16.xpose.msra.mxu0 0
    %465 = vmatprep.subr.bf16.mxu0 0
    %466 = vmatpush1.bf16.xpose.msra.mxu0 0
    %467 = vmatprep.subr.bf16.mxu0 0
    %468 = vmatpush1.bf16.xpose.msra.mxu0 0
    %469 = vmatprep.subr.bf16.mxu0 0
    %470 = vmatpush1.bf16.xpose.msra.mxu0 0
    %471 = vmatprep.subr.bf16.mxu0 0
    %472 = vmatpush1.bf16.xpose.msra.mxu0 0
    %473 = vmatprep.subr.bf16.mxu0 0
    %474 = vmatpush1.bf16.xpose.msra.mxu0 0
    %475 = vmatprep.subr.bf16.mxu0 0
    %476 = vmatpush1.bf16.xpose.msra.mxu0 %v459
    %477 = vmatprep.subr.bf16.mxu0 0
    %478 = vmatpush2.bf16.xpose.msra.mxu0 0
    %479 = vmatprep.subr.bf16.mxu0 0
    %480 = vmatpush2.bf16.xpose.msra.mxu0 0
    %481 = vmatprep.subr.bf16.mxu0 0
    %482 = vmatpush2.bf16.xpose.msra.mxu0 0
    %483 = vmatprep.subr.bf16.mxu0 0
    %484 = vmatpush2.bf16.xpose.msra.mxu0 0
    %485 = vmatprep.subr.bf16.mxu0 0
    %486 = vmatpush2.bf16.xpose.msra.mxu0 0
    %487 = vmatprep.subr.bf16.mxu0 0
    %488 = vmatpush2.bf16.xpose.msra.mxu0 0
    %489 = vmatprep.subr.bf16.mxu0 0
    %490 = vmatpush2.bf16.xpose.msra.mxu0 0
    %491 = vmatprep.subr.bf16.mxu0 0
    %492 = vmatpush2.bf16.xpose.msra.mxu0 0
    %493 = vmatprep.mubr.bf16.mxu0 0
    %494 = vmatmul.mubr.bf16.gmra.mxu0 %v456
    %v495 = vpop.f32.mrf.mxu0
    %v496 = vadd.f32 0.0, %v495
    %v497 = vpop.f32.mrf.mxu0
    %v498 = vpop.f32.mrf.mxu0
    %v499 = vpop.f32.mrf.mxu0
    %500 = vdwg.mxu0
    %v501 = vmul.f32 %v446, 0.17677669
    %v502 = vmul.f32 %v496, 0.17677669
    %v503 = vsel %vm275, %v501, -1e+30
    %v504 = vsel %vm275, %v502, -1e+30
    %v505 = vsel %vm176, %v503, -inf
    %506 = vmax.xlane.f32.xlu0 %v505
    %v507 = vpop.xlane.xlu0 %506
    %v508 = vsel %vm176, %v504, -inf
    %509 = vmax.xlane.f32.xlu0 %v508
    %v510 = vpop.xlane.xlu0 %509
    %v511 = vsub.f32 %v503, %v507
    %v512 = vsub.f32 %v504, %v510
    %v513 = vmul.f32 %v511, 1.442695
    %v514 = vpow.pop %v513
    %v515 = vmul.f32 %v512, 1.442695
    %v516 = vpow.pop %v515
    %v517 = vsel %vm176, %v514, 0.0
    %518 = vadd.xlane.f32.xlu0 %v517
    %v519 = vpop.xlane.xlu0 %518
    %v520 = vsel %vm176, %v516, 0.0
    %521 = vadd.xlane.f32.xlu0 %v520
    %v522 = vpop.xlane.xlu0 %521
    %v523 = vrcp.pop %v519
    %v524 = vrcp.pop %v522
    %v525 = vmul.f32 %v514, %v523
    %v526 = vmul.f32 %v516, %v524
    %v527 = vpack.c.bf16 %v525, %v525
    %v528 = vpack.c.bf16 %v526, %v526
    %529 = vrot.lane.b32.xlu0 %v171, 56
    %v530 = vpop.permute.xlu0 %529
    %v532 = vsel %vm176, %v527, 0
    %v535 = vsel %vm307, %v530, 0
    %537 = vmatprep.subr.bf16.mxu0 0
    %538 = vmatpush1.bf16.msra.mxu0 0
    %539 = vmatprep.subr.bf16.mxu0 0
    %540 = vmatpush1.bf16.msra.mxu0 0
    %541 = vmatprep.subr.bf16.mxu0 0
    %542 = vmatpush1.bf16.msra.mxu0 0
    %543 = vmatprep.subr.bf16.mxu0 0
    %544 = vmatpush1.bf16.msra.mxu0 0
    %545 = vmatprep.subr.bf16.mxu0 0
    %546 = vmatpush1.bf16.msra.mxu0 0
    %547 = vmatprep.subr.bf16.mxu0 0
    %548 = vmatpush1.bf16.msra.mxu0 0
    %549 = vmatprep.subr.bf16.mxu0 0
    %550 = vmatpush1.bf16.msra.mxu0 0
    %551 = vmatprep.subr.bf16.mxu0 0
    %552 = vmatpush1.bf16.msra.mxu0 %v535
    %553 = vmatprep.subr.bf16.mxu0 0
    %554 = vmatpush2.bf16.msra.mxu0 0
    %555 = vmatprep.subr.bf16.mxu0 0
    %556 = vmatpush2.bf16.msra.mxu0 0
    %557 = vmatprep.subr.bf16.mxu0 0
    %558 = vmatpush2.bf16.msra.mxu0 0
    %559 = vmatprep.subr.bf16.mxu0 0
    %560 = vmatpush2.bf16.msra.mxu0 0
    %561 = vmatprep.subr.bf16.mxu0 0
    %562 = vmatpush2.bf16.msra.mxu0 0
    %563 = vmatprep.subr.bf16.mxu0 0
    %564 = vmatpush2.bf16.msra.mxu0 0
    %565 = vmatprep.subr.bf16.mxu0 0
    %566 = vmatpush2.bf16.msra.mxu0 0
    %567 = vmatprep.subr.bf16.mxu0 0
    %568 = vmatpush2.bf16.msra.mxu0 0
    %569 = vmatprep.mubr.bf16.mxu0 0
    %570 = vmatmul.mubr.bf16.gmra.mxu0 %v532
    %v571 = vpop.f32.mrf.mxu0
    %v572 = vadd.f32 0.0, %v571
    %v573 = vpop.f32.mrf.mxu0
    %v574 = vpop.f32.mrf.mxu0
    %v575 = vpop.f32.mrf.mxu0
    %576 = vdwg.mxu0
    %577 = vrot.lane.b32.xlu0 %v172, 56
    %v578 = vpop.permute.xlu0 %577
    %v580 = vsel %vm176, %v528, 0
    %v583 = vsel %vm307, %v578, 0
    %585 = vmatprep.subr.bf16.mxu0 0
    %586 = vmatpush1.bf16.msra.mxu0 0
    %587 = vmatprep.subr.bf16.mxu0 0
    %588 = vmatpush1.bf16.msra.mxu0 0
    %589 = vmatprep.subr.bf16.mxu0 0
    %590 = vmatpush1.bf16.msra.mxu0 0
    %591 = vmatprep.subr.bf16.mxu0 0
    %592 = vmatpush1.bf16.msra.mxu0 0
    %593 = vmatprep.subr.bf16.mxu0 0
    %594 = vmatpush1.bf16.msra.mxu0 0
    %595 = vmatprep.subr.bf16.mxu0 0
    %596 = vmatpush1.bf16.msra.mxu0 0
    %597 = vmatprep.subr.bf16.mxu0 0
    %598 = vmatpush1.bf16.msra.mxu0 0
    %599 = vmatprep.subr.bf16.mxu0 0
    %600 = vmatpush1.bf16.msra.mxu0 %v583
    %601 = vmatprep.subr.bf16.mxu0 0
    %602 = vmatpush2.bf16.msra.mxu0 0
    %603 = vmatprep.subr.bf16.mxu0 0
    %604 = vmatpush2.bf16.msra.mxu0 0
    %605 = vmatprep.subr.bf16.mxu0 0
    %606 = vmatpush2.bf16.msra.mxu0 0
    %607 = vmatprep.subr.bf16.mxu0 0
    %608 = vmatpush2.bf16.msra.mxu0 0
    %609 = vmatprep.subr.bf16.mxu0 0
    %610 = vmatpush2.bf16.msra.mxu0 0
    %611 = vmatprep.subr.bf16.mxu0 0
    %612 = vmatpush2.bf16.msra.mxu0 0
    %613 = vmatprep.subr.bf16.mxu0 0
    %614 = vmatpush2.bf16.msra.mxu0 0
    %615 = vmatprep.subr.bf16.mxu0 0
    %616 = vmatpush2.bf16.msra.mxu0 0
    %617 = vmatprep.mubr.bf16.mxu0 0
    %618 = vmatmul.mubr.bf16.gmra.mxu0 %v580
    %v619 = vpop.f32.mrf.mxu0
    %v620 = vadd.f32 0.0, %v619
    %v621 = vpop.f32.mrf.mxu0
    %v622 = vpop.f32.mrf.mxu0
    %v623 = vpop.f32.mrf.mxu0
    %624 = vdwg.mxu0
    %627 = vrot.lane.b32.xlu0 %v572, 8
    %v628 = vpop.permute.xlu0 %627
    %629 = vrot.lane.b32.xlu0 %v620, 8
    %v630 = vpop.permute.xlu0 %629
    %vm633 = vcmask 130112
    %634 = vst.msk [vmem:[#allocation2] sm:$0xff] %vm633, %v628
    %635 = vst.msk [vmem:[#allocation2 + $0x8] sm:$0xff] %vm633, %v630
    %636 = vrot.lane.b32.xlu0 %v171, 112
    %v637 = vpop.permute.xlu0 %636
    %638 = vrot.lane.b32.xlu0 %v171, 80
    %v639 = vpop.permute.xlu0 %638
    %v641 = vsel %vm176, %v637, 0
    %v644 = vsel %vm176, %v639, 0
    %646 = vmatprep.subr.bf16.mxu0 0
    %647 = vmatpush1.bf16.xpose.msra.mxu0 0
    %648 = vmatprep.subr.bf16.mxu0 0
    %649 = vmatpush1.bf16.xpose.msra.mxu0 0
    %650 = vmatprep.subr.bf16.mxu0 0
    %651 = vmatpush1.bf16.xpose.msra.mxu0 0
    %652 = vmatprep.subr.bf16.mxu0 0
    %653 = vmatpush1.bf16.xpose.msra.mxu0 0
    %654 = vmatprep.subr.bf16.mxu0 0
    %655 = vmatpush1.bf16.xpose.msra.mxu0 0
    %656 = vmatprep.subr.bf16.mxu0 0
    %657 = vmatpush1.bf16.xpose.msra.mxu0 0
    %658 = vmatprep.subr.bf16.mxu0 0
    %659 = vmatpush1.bf16.xpose.msra.mxu0 0
    %660 = vmatprep.subr.bf16.mxu0 0
    %661 = vmatpush1.bf16.xpose.msra.mxu0 %v644
    %662 = vmatprep.subr.bf16.mxu0 0
    %663 = vmatpush2.bf16.xpose.msra.mxu0 0
    %664 = vmatprep.subr.bf16.mxu0 0
    %665 = vmatpush2.bf16.xpose.msra.mxu0 0
    %666 = vmatprep.subr.bf16.mxu0 0
    %667 = vmatpush2.bf16.xpose.msra.mxu0 0
    %668 = vmatprep.subr.bf16.mxu0 0
    %669 = vmatpush2.bf16.xpose.msra.mxu0 0
    %670 = vmatprep.subr.bf16.mxu0 0
    %671 = vmatpush2.bf16.xpose.msra.mxu0 0
    %672 = vmatprep.subr.bf16.mxu0 0
    %673 = vmatpush2.bf16.xpose.msra.mxu0 0
    %674 = vmatprep.subr.bf16.mxu0 0
    %675 = vmatpush2.bf16.xpose.msra.mxu0 0
    %676 = vmatprep.subr.bf16.mxu0 0
    %677 = vmatpush2.bf16.xpose.msra.mxu0 0
    %678 = vmatprep.mubr.bf16.mxu0 0
    %679 = vmatmul.mubr.bf16.gmra.mxu0 %v641
    %v680 = vpop.f32.mrf.mxu0
    %v681 = vadd.f32 0.0, %v680
    %v682 = vpop.f32.mrf.mxu0
    %v683 = vpop.f32.mrf.mxu0
    %v684 = vpop.f32.mrf.mxu0
    %685 = vdwg.mxu0
    %686 = vrot.lane.b32.xlu0 %v172, 112
    %v687 = vpop.permute.xlu0 %686
    %688 = vrot.lane.b32.xlu0 %v172, 80
    %v689 = vpop.permute.xlu0 %688
    %v691 = vsel %vm176, %v687, 0
    %v694 = vsel %vm176, %v689, 0
    %696 = vmatprep.subr.bf16.mxu0 0
    %697 = vmatpush1.bf16.xpose.msra.mxu0 0
    %698 = vmatprep.subr.bf16.mxu0 0
    %699 = vmatpush1.bf16.xpose.msra.mxu0 0
    %700 = vmatprep.subr.bf16.mxu0 0
    %701 = vmatpush1.bf16.xpose.msra.mxu0 0
    %702 = vmatprep.subr.bf16.mxu0 0
    %703 = vmatpush1.bf16.xpose.msra.mxu0 0
    %704 = vmatprep.subr.bf16.mxu0 0
    %705 = vmatpush1.bf16.xpose.msra.mxu0 0
    %706 = vmatprep.subr.bf16.mxu0 0
    %707 = vmatpush1.bf16.xpose.msra.mxu0 0
    %708 = vmatprep.subr.bf16.mxu0 0
    %709 = vmatpush1.bf16.xpose.msra.mxu0 0
    %710 = vmatprep.subr.bf16.mxu0 0
    %711 = vmatpush1.bf16.xpose.msra.mxu0 %v694
    %712 = vmatprep.subr.bf16.mxu0 0
    %713 = vmatpush2.bf16.xpose.msra.mxu0 0
    %714 = vmatprep.subr.bf16.mxu0 0
    %715 = vmatpush2.bf16.xpose.msra.mxu0 0
    %716 = vmatprep.subr.bf16.mxu0 0
    %717 = vmatpush2.bf16.xpose.msra.mxu0 0
    %718 = vmatprep.subr.bf16.mxu0 0
    %719 = vmatpush2.bf16.xpose.msra.mxu0 0
    %720 = vmatprep.subr.bf16.mxu0 0
    %721 = vmatpush2.bf16.xpose.msra.mxu0 0
    %722 = vmatprep.subr.bf16.mxu0 0
    %723 = vmatpush2.bf16.xpose.msra.mxu0 0
    %724 = vmatprep.subr.bf16.mxu0 0
    %725 = vmatpush2.bf16.xpose.msra.mxu0 0
    %726 = vmatprep.subr.bf16.mxu0 0
    %727 = vmatpush2.bf16.xpose.msra.mxu0 0
    %728 = vmatprep.mubr.bf16.mxu0 0
    %729 = vmatmul.mubr.bf16.gmra.mxu0 %v691
    %v730 = vpop.f32.mrf.mxu0
    %v731 = vadd.f32 0.0, %v730
    %v732 = vpop.f32.mrf.mxu0
    %v733 = vpop.f32.mrf.mxu0
    %v734 = vpop.f32.mrf.mxu0
    %735 = vdwg.mxu0
    %v736 = vmul.f32 %v681, 0.17677669
    %v737 = vmul.f32 %v731, 0.17677669
    %v738 = vsel %vm275, %v736, -1e+30
    %v739 = vsel %vm275, %v737, -1e+30
    %v740 = vsel %vm176, %v738, -inf
    %741 = vmax.xlane.f32.xlu0 %v740
    %v742 = vpop.xlane.xlu0 %741
    %v743 = vsel %vm176, %v739, -inf
    %744 = vmax.xlane.f32.xlu0 %v743
    %v745 = vpop.xlane.xlu0 %744
    %v746 = vsub.f32 %v738, %v742
    %v747 = vsub.f32 %v739, %v745
    %v748 = vmul.f32 %v746, 1.442695
    %v749 = vpow.pop %v748
    %v750 = vmul.f32 %v747, 1.442695
    %v751 = vpow.pop %v750
    %v752 = vsel %vm176, %v749, 0.0
    %753 = vadd.xlane.f32.xlu0 %v752
    %v754 = vpop.xlane.xlu0 %753
    %v755 = vsel %vm176, %v751, 0.0
    %756 = vadd.xlane.f32.xlu0 %v755
    %v757 = vpop.xlane.xlu0 %756
    %v758 = vrcp.pop %v754
    %v759 = vrcp.pop %v757
    %v760 = vmul.f32 %v749, %v758
    %v761 = vmul.f32 %v751, %v759
    %v762 = vpack.c.bf16 %v760, %v760
    %v763 = vpack.c.bf16 %v761, %v761
    %764 = vrot.lane.b32.xlu0 %v171, 48
    %v765 = vpop.permute.xlu0 %764
    %v767 = vsel %vm176, %v762, 0
    %v770 = vsel %vm307, %v765, 0
    %772 = vmatprep.subr.bf16.mxu0 0
    %773 = vmatpush1.bf16.msra.mxu0 0
    %774 = vmatprep.subr.bf16.mxu0 0
    %775 = vmatpush1.bf16.msra.mxu0 0
    %776 = vmatprep.subr.bf16.mxu0 0
    %777 = vmatpush1.bf16.msra.mxu0 0
    %778 = vmatprep.subr.bf16.mxu0 0
    %779 = vmatpush1.bf16.msra.mxu0 0
    %780 = vmatprep.subr.bf16.mxu0 0
    %781 = vmatpush1.bf16.msra.mxu0 0
    %782 = vmatprep.subr.bf16.mxu0 0
    %783 = vmatpush1.bf16.msra.mxu0 0
    %784 = vmatprep.subr.bf16.mxu0 0
    %785 = vmatpush1.bf16.msra.mxu0 0
    %786 = vmatprep.subr.bf16.mxu0 0
    %787 = vmatpush1.bf16.msra.mxu0 %v770
    %788 = vmatprep.subr.bf16.mxu0 0
    %789 = vmatpush2.bf16.msra.mxu0 0
    %790 = vmatprep.subr.bf16.mxu0 0
    %791 = vmatpush2.bf16.msra.mxu0 0
    %792 = vmatprep.subr.bf16.mxu0 0
    %793 = vmatpush2.bf16.msra.mxu0 0
    %794 = vmatprep.subr.bf16.mxu0 0
    %795 = vmatpush2.bf16.msra.mxu0 0
    %796 = vmatprep.subr.bf16.mxu0 0
    %797 = vmatpush2.bf16.msra.mxu0 0
    %798 = vmatprep.subr.bf16.mxu0 0
    %799 = vmatpush2.bf16.msra.mxu0 0
    %800 = vmatprep.subr.bf16.mxu0 0
    %801 = vmatpush2.bf16.msra.mxu0 0
    %802 = vmatprep.subr.bf16.mxu0 0
    %803 = vmatpush2.bf16.msra.mxu0 0
    %804 = vmatprep.mubr.bf16.mxu0 0
    %805 = vmatmul.mubr.bf16.gmra.mxu0 %v767
    %v806 = vpop.f32.mrf.mxu0
    %v807 = vadd.f32 0.0, %v806
    %v808 = vpop.f32.mrf.mxu0
    %v809 = vpop.f32.mrf.mxu0
    %v810 = vpop.f32.mrf.mxu0
    %811 = vdwg.mxu0
    %812 = vrot.lane.b32.xlu0 %v172, 48
    %v813 = vpop.permute.xlu0 %812
    %v815 = vsel %vm176, %v763, 0
    %v818 = vsel %vm307, %v813, 0
    %820 = vmatprep.subr.bf16.mxu0 0
    %821 = vmatpush1.bf16.msra.mxu0 0
    %822 = vmatprep.subr.bf16.mxu0 0
    %823 = vmatpush1.bf16.msra.mxu0 0
    %824 = vmatprep.subr.bf16.mxu0 0
    %825 = vmatpush1.bf16.msra.mxu0 0
    %826 = vmatprep.subr.bf16.mxu0 0
    %827 = vmatpush1.bf16.msra.mxu0 0
    %828 = vmatprep.subr.bf16.mxu0 0
    %829 = vmatpush1.bf16.msra.mxu0 0
    %830 = vmatprep.subr.bf16.mxu0 0
    %831 = vmatpush1.bf16.msra.mxu0 0
    %832 = vmatprep.subr.bf16.mxu0 0
    %833 = vmatpush1.bf16.msra.mxu0 0
    %834 = vmatprep.subr.bf16.mxu0 0
    %835 = vmatpush1.bf16.msra.mxu0 %v818
    %836 = vmatprep.subr.bf16.mxu0 0
    %837 = vmatpush2.bf16.msra.mxu0 0
    %838 = vmatprep.subr.bf16.mxu0 0
    %839 = vmatpush2.bf16.msra.mxu0 0
    %840 = vmatprep.subr.bf16.mxu0 0
    %841 = vmatpush2.bf16.msra.mxu0 0
    %842 = vmatprep.subr.bf16.mxu0 0
    %843 = vmatpush2.bf16.msra.mxu0 0
    %844 = vmatprep.subr.bf16.mxu0 0
    %845 = vmatpush2.bf16.msra.mxu0 0
    %846 = vmatprep.subr.bf16.mxu0 0
    %847 = vmatpush2.bf16.msra.mxu0 0
    %848 = vmatprep.subr.bf16.mxu0 0
    %849 = vmatpush2.bf16.msra.mxu0 0
    %850 = vmatprep.subr.bf16.mxu0 0
    %851 = vmatpush2.bf16.msra.mxu0 0
    %852 = vmatprep.mubr.bf16.mxu0 0
    %853 = vmatmul.mubr.bf16.gmra.mxu0 %v815
    %v854 = vpop.f32.mrf.mxu0
    %v855 = vadd.f32 0.0, %v854
    %v856 = vpop.f32.mrf.mxu0
    %v857 = vpop.f32.mrf.mxu0
    %v858 = vpop.f32.mrf.mxu0
    %859 = vdwg.mxu0
    %862 = vrot.lane.b32.xlu0 %v807, 16
    %v863 = vpop.permute.xlu0 %862
    %864 = vrot.lane.b32.xlu0 %v855, 16
    %v865 = vpop.permute.xlu0 %864
    %vm868 = vcmask 195712
    %869 = vst.msk [vmem:[#allocation2] sm:$0xff] %vm868, %v863
    %870 = vst.msk [vmem:[#allocation2 + $0x8] sm:$0xff] %vm868, %v865
    %871 = vrot.lane.b32.xlu0 %v171, 104
    %v872 = vpop.permute.xlu0 %871
    %873 = vrot.lane.b32.xlu0 %v171, 72
    %v874 = vpop.permute.xlu0 %873
    %v876 = vsel %vm176, %v872, 0
    %v879 = vsel %vm176, %v874, 0
    %881 = vmatprep.subr.bf16.mxu0 0
    %882 = vmatpush1.bf16.xpose.msra.mxu0 0
    %883 = vmatprep.subr.bf16.mxu0 0
    %884 = vmatpush1.bf16.xpose.msra.mxu0 0
    %885 = vmatprep.subr.bf16.mxu0 0
    %886 = vmatpush1.bf16.xpose.msra.mxu0 0
    %887 = vmatprep.subr.bf16.mxu0 0
    %888 = vmatpush1.bf16.xpose.msra.mxu0 0
    %889 = vmatprep.subr.bf16.mxu0 0
    %890 = vmatpush1.bf16.xpose.msra.mxu0 0
    %891 = vmatprep.subr.bf16.mxu0 0
    %892 = vmatpush1.bf16.xpose.msra.mxu0 0
    %893 = vmatprep.subr.bf16.mxu0 0
    %894 = vmatpush1.bf16.xpose.msra.mxu0 0
    %895 = vmatprep.subr.bf16.mxu0 0
    %896 = vmatpush1.bf16.xpose.msra.mxu0 %v879
    %897 = vmatprep.subr.bf16.mxu0 0
    %898 = vmatpush2.bf16.xpose.msra.mxu0 0
    %899 = vmatprep.subr.bf16.mxu0 0
    %900 = vmatpush2.bf16.xpose.msra.mxu0 0
    %901 = vmatprep.subr.bf16.mxu0 0
    %902 = vmatpush2.bf16.xpose.msra.mxu0 0
    %903 = vmatprep.subr.bf16.mxu0 0
    %904 = vmatpush2.bf16.xpose.msra.mxu0 0
    %905 = vmatprep.subr.bf16.mxu0 0
    %906 = vmatpush2.bf16.xpose.msra.mxu0 0
    %907 = vmatprep.subr.bf16.mxu0 0
    %908 = vmatpush2.bf16.xpose.msra.mxu0 0
    %909 = vmatprep.subr.bf16.mxu0 0
    %910 = vmatpush2.bf16.xpose.msra.mxu0 0
    %911 = vmatprep.subr.bf16.mxu0 0
    %912 = vmatpush2.bf16.xpose.msra.mxu0 0
    %913 = vmatprep.mubr.bf16.mxu0 0
    %914 = vmatmul.mubr.bf16.gmra.mxu0 %v876
    %v915 = vpop.f32.mrf.mxu0
    %v916 = vadd.f32 0.0, %v915
    %v917 = vpop.f32.mrf.mxu0
    %v918 = vpop.f32.mrf.mxu0
    %v919 = vpop.f32.mrf.mxu0
    %920 = vdwg.mxu0
    %921 = vrot.lane.b32.xlu0 %v172, 104
    %v922 = vpop.permute.xlu0 %921
    %923 = vrot.lane.b32.xlu0 %v172, 72
    %v924 = vpop.permute.xlu0 %923
    %v926 = vsel %vm176, %v922, 0
    %v929 = vsel %vm176, %v924, 0
    %931 = vmatprep.subr.bf16.mxu0 0
    %932 = vmatpush1.bf16.xpose.msra.mxu0 0
    %933 = vmatprep.subr.bf16.mxu0 0
    %934 = vmatpush1.bf16.xpose.msra.mxu0 0
    %935 = vmatprep.subr.bf16.mxu0 0
    %936 = vmatpush1.bf16.xpose.msra.mxu0 0
    %937 = vmatprep.subr.bf16.mxu0 0
    %938 = vmatpush1.bf16.xpose.msra.mxu0 0
    %939 = vmatprep.subr.bf16.mxu0 0
    %940 = vmatpush1.bf16.xpose.msra.mxu0 0
    %941 = vmatprep.subr.bf16.mxu0 0
    %942 = vmatpush1.bf16.xpose.msra.mxu0 0
    %943 = vmatprep.subr.bf16.mxu0 0
    %944 = vmatpush1.bf16.xpose.msra.mxu0 0
    %945 = vmatprep.subr.bf16.mxu0 0
    %946 = vmatpush1.bf16.xpose.msra.mxu0 %v929
    %947 = vmatprep.subr.bf16.mxu0 0
    %948 = vmatpush2.bf16.xpose.msra.mxu0 0
    %949 = vmatprep.subr.bf16.mxu0 0
    %950 = vmatpush2.bf16.xpose.msra.mxu0 0
    %951 = vmatprep.subr.bf16.mxu0 0
    %952 = vmatpush2.bf16.xpose.msra.mxu0 0
    %953 = vmatprep.subr.bf16.mxu0 0
    %954 = vmatpush2.bf16.xpose.msra.mxu0 0
    %955 = vmatprep.subr.bf16.mxu0 0
    %956 = vmatpush2.bf16.xpose.msra.mxu0 0
    %957 = vmatprep.subr.bf16.mxu0 0
    %958 = vmatpush2.bf16.xpose.msra.mxu0 0
    %959 = vmatprep.subr.bf16.mxu0 0
    %960 = vmatpush2.bf16.xpose.msra.mxu0 0
    %961 = vmatprep.subr.bf16.mxu0 0
    %962 = vmatpush2.bf16.xpose.msra.mxu0 0
    %963 = vmatprep.mubr.bf16.mxu0 0
    %964 = vmatmul.mubr.bf16.gmra.mxu0 %v926
    %v965 = vpop.f32.mrf.mxu0
    %v966 = vadd.f32 0.0, %v965
    %v967 = vpop.f32.mrf.mxu0
    %v968 = vpop.f32.mrf.mxu0
    %v969 = vpop.f32.mrf.mxu0
    %970 = vdwg.mxu0
    %v971 = vmul.f32 %v916, 0.17677669
    %v972 = vmul.f32 %v966, 0.17677669
    %v973 = vsel %vm275, %v971, -1e+30
    %v974 = vsel %vm275, %v972, -1e+30
    %v975 = vsel %vm176, %v973, -inf
    %976 = vmax.xlane.f32.xlu0 %v975
    %v977 = vpop.xlane.xlu0 %976
    %v978 = vsel %vm176, %v974, -inf
    %979 = vmax.xlane.f32.xlu0 %v978
    %v980 = vpop.xlane.xlu0 %979
    %v981 = vsub.f32 %v973, %v977
    %v982 = vsub.f32 %v974, %v980
    %v983 = vmul.f32 %v981, 1.442695
    %v984 = vpow.pop %v983
    %v985 = vmul.f32 %v982, 1.442695
    %v986 = vpow.pop %v985
    %v987 = vsel %vm176, %v984, 0.0
    %988 = vadd.xlane.f32.xlu0 %v987
    %v989 = vpop.xlane.xlu0 %988
    %v990 = vsel %vm176, %v986, 0.0
    %991 = vadd.xlane.f32.xlu0 %v990
    %v992 = vpop.xlane.xlu0 %991
    %v993 = vrcp.pop %v989
    %v994 = vrcp.pop %v992
    %v995 = vmul.f32 %v984, %v993
    %v996 = vmul.f32 %v986, %v994
    %v997 = vpack.c.bf16 %v995, %v995
    %v998 = vpack.c.bf16 %v996, %v996
    %999 = vrot.lane.b32.xlu0 %v171, 40
    %v1000 = vpop.permute.xlu0 %999
    %v1002 = vsel %vm176, %v997, 0
    %v1005 = vsel %vm307, %v1000, 0
    %1007 = vmatprep.subr.bf16.mxu0 0
    %1008 = vmatpush1.bf16.msra.mxu0 0
    %1009 = vmatprep.subr.bf16.mxu0 0
    %1010 = vmatpush1.bf16.msra.mxu0 0
    %1011 = vmatprep.subr.bf16.mxu0 0
    %1012 = vmatpush1.bf16.msra.mxu0 0
    %1013 = vmatprep.subr.bf16.mxu0 0
    %1014 = vmatpush1.bf16.msra.mxu0 0
    %1015 = vmatprep.subr.bf16.mxu0 0
    %1016 = vmatpush1.bf16.msra.mxu0 0
    %1017 = vmatprep.subr.bf16.mxu0 0
    %1018 = vmatpush1.bf16.msra.mxu0 0
    %1019 = vmatprep.subr.bf16.mxu0 0
    %1020 = vmatpush1.bf16.msra.mxu0 0
    %1021 = vmatprep.subr.bf16.mxu0 0
    %1022 = vmatpush1.bf16.msra.mxu0 %v1005
    %1023 = vmatprep.subr.bf16.mxu0 0
    %1024 = vmatpush2.bf16.msra.mxu0 0
    %1025 = vmatprep.subr.bf16.mxu0 0
    %1026 = vmatpush2.bf16.msra.mxu0 0
    %1027 = vmatprep.subr.bf16.mxu0 0
    %1028 = vmatpush2.bf16.msra.mxu0 0
    %1029 = vmatprep.subr.bf16.mxu0 0
    %1030 = vmatpush2.bf16.msra.mxu0 0
    %1031 = vmatprep.subr.bf16.mxu0 0
    %1032 = vmatpush2.bf16.msra.mxu0 0
    %1033 = vmatprep.subr.bf16.mxu0 0
    %1034 = vmatpush2.bf16.msra.mxu0 0
    %1035 = vmatprep.subr.bf16.mxu0 0
    %1036 = vmatpush2.bf16.msra.mxu0 0
    %1037 = vmatprep.subr.bf16.mxu0 0
    %1038 = vmatpush2.bf16.msra.mxu0 0
    %1039 = vmatprep.mubr.bf16.mxu0 0
    %1040 = vmatmul.mubr.bf16.gmra.mxu0 %v1002
    %v1041 = vpop.f32.mrf.mxu0
    %v1042 = vadd.f32 0.0, %v1041
    %v1043 = vpop.f32.mrf.mxu0
    %v1044 = vpop.f32.mrf.mxu0
    %v1045 = vpop.f32.mrf.mxu0
    %1046 = vdwg.mxu0
    %1047 = vrot.lane.b32.xlu0 %v172, 40
    %v1048 = vpop.permute.xlu0 %1047
    %v1050 = vsel %vm176, %v998, 0
    %v1053 = vsel %vm307, %v1048, 0
    %1055 = vmatprep.subr.bf16.mxu0 0
    %1056 = vmatpush1.bf16.msra.mxu0 0
    %1057 = vmatprep.subr.bf16.mxu0 0
    %1058 = vmatpush1.bf16.msra.mxu0 0
    %1059 = vmatprep.subr.bf16.mxu0 0
    %1060 = vmatpush1.bf16.msra.mxu0 0
    %1061 = vmatprep.subr.bf16.mxu0 0
    %1062 = vmatpush1.bf16.msra.mxu0 0
    %1063 = vmatprep.subr.bf16.mxu0 0
    %1064 = vmatpush1.bf16.msra.mxu0 0
    %1065 = vmatprep.subr.bf16.mxu0 0
    %1066 = vmatpush1.bf16.msra.mxu0 0
    %1067 = vmatprep.subr.bf16.mxu0 0
    %1068 = vmatpush1.bf16.msra.mxu0 0
    %1069 = vmatprep.subr.bf16.mxu0 0
    %1070 = vmatpush1.bf16.msra.mxu0 %v1053
    %1071 = vmatprep.subr.bf16.mxu0 0
    %1072 = vmatpush2.bf16.msra.mxu0 0
    %1073 = vmatprep.subr.bf16.mxu0 0
    %1074 = vmatpush2.bf16.msra.mxu0 0
    %1075 = vmatprep.subr.bf16.mxu0 0
    %1076 = vmatpush2.bf16.msra.mxu0 0
    %1077 = vmatprep.subr.bf16.mxu0 0
    %1078 = vmatpush2.bf16.msra.mxu0 0
    %1079 = vmatprep.subr.bf16.mxu0 0
    %1080 = vmatpush2.bf16.msra.mxu0 0
    %1081 = vmatprep.subr.bf16.mxu0 0
    %1082 = vmatpush2.bf16.msra.mxu0 0
    %1083 = vmatprep.subr.bf16.mxu0 0
    %1084 = vmatpush2.bf16.msra.mxu0 0
    %1085 = vmatprep.subr.bf16.mxu0 0
    %1086 = vmatpush2.bf16.msra.mxu0 0
    %1087 = vmatprep.mubr.bf16.mxu0 0
    %1088 = vmatmul.mubr.bf16.gmra.mxu0 %v1050
    %v1089 = vpop.f32.mrf.mxu0
    %v1090 = vadd.f32 0.0, %v1089
    %v1091 = vpop.f32.mrf.mxu0
    %v1092 = vpop.f32.mrf.mxu0
    %v1093 = vpop.f32.mrf.mxu0
    %1094 = vdwg.mxu0
    %1097 = vrot.lane.b32.xlu0 %v1042, 24
    %v1098 = vpop.permute.xlu0 %1097
    %1099 = vrot.lane.b32.xlu0 %v1090, 24
    %v1100 = vpop.permute.xlu0 %1099
    %vm1103 = vcmask 261312
    %1104 = vst.msk [vmem:[#allocation2] sm:$0xff] %vm1103, %v1098
    %1105 = vst.msk [vmem:[#allocation2 + $0x8] sm:$0xff] %vm1103, %v1100
    %v1106 = vld [vmem:[#allocation2] sm:$0xff]
    %v1107 = vld [vmem:[#allocation2 + $0x8] sm:$0xff]
    %v1108 = vpack.c.bf16 %v1107, %v1106
    %v1109 = vld [vmem:[%s2] sm:$0xf]
    %v1110 = vld [vmem:[%s2 + $0x4] sm:$0xf]
    %v1111 = vld [vmem:[%s2 + $0x8] sm:$0xf]
    %v1112 = vld [vmem:[%s2 + $0xc] sm:$0xf]
    %v1113 = vld [vmem:[%s3] sm:$0x1]
    %v1115 = vlaneseq
    %v1116 = vshrl.u32 %v1115, 7
    %v1117 = vsub.s32 0, %v1116
    %v1118 = vrot.slane %v1113, %v1117
    %v1124 = vunpack.c.l.b16 %v1109
    %v1125 = vunpack.c.l.b16 %v1110
    %v1126 = vunpack.c.l.b16 %v1111
    %v1127 = vunpack.c.l.b16 %v1112
    %v1128 = vpack.c.b16 %v1125, %v1124
    %v1129 = vpack.c.b16 %v1127, %v1126
    %v1133 = vsel %vm47, %v1108, 0
    %1135 = vmatprep.subr.bf16.mxu0 0
    %1136 = vmatpush1.bf16.msra.mxu0 0
    %1137 = vmatprep.subr.bf16.mxu0 0
    %1138 = vmatpush1.bf16.msra.mxu0 0
    %1139 = vmatprep.subr.bf16.mxu0 0
    %1140 = vmatpush1.bf16.msra.mxu0 0
    %1141 = vmatprep.subr.bf16.mxu0 0
    %1142 = vmatpush1.bf16.msra.mxu0 0
    %1143 = vmatprep.subr.bf16.mxu0 0
    %1144 = vmatpush1.bf16.msra.mxu0 0
    %1145 = vmatprep.subr.bf16.mxu0 0
    %1146 = vmatpush1.bf16.msra.mxu0 0
    %1147 = vmatprep.subr.bf16.mxu0 0
    %1148 = vmatpush1.bf16.msra.mxu0 %v1129
    %1149 = vmatprep.subr.bf16.mxu0 0
    %1150 = vmatpush1.bf16.msra.mxu0 %v1128
    %1151 = vmatprep.subr.bf16.mxu0 0
    %1152 = vmatpush2.bf16.msra.mxu0 0
    %1153 = vmatprep.subr.bf16.mxu0 0
    %1154 = vmatpush2.bf16.msra.mxu0 0
    %1155 = vmatprep.subr.bf16.mxu0 0
    %1156 = vmatpush2.bf16.msra.mxu0 0
    %1157 = vmatprep.subr.bf16.mxu0 0
    %1158 = vmatpush2.bf16.msra.mxu0 0
    %1159 = vmatprep.subr.bf16.mxu0 0
    %1160 = vmatpush2.bf16.msra.mxu0 0
    %1161 = vmatprep.subr.bf16.mxu0 0
    %1162 = vmatpush2.bf16.msra.mxu0 0
    %1163 = vmatprep.subr.bf16.mxu0 0
    %1164 = vmatpush2.bf16.msra.mxu0 0
    %1165 = vmatprep.subr.bf16.mxu0 0
    %1166 = vmatpush2.bf16.msra.mxu0 0
    %1167 = vmatprep.mubr.bf16.mxu0 0
    %1168 = vmatmul.mubr.bf16.gmra.mxu0 %v1133
    %v1169 = vpop.f32.mrf.mxu0
    %v1170 = vadd.f32 %v1118, %v1169
    %v1171 = vpop.f32.mrf.mxu0
    %v1172 = vpop.f32.mrf.mxu0
    %v1173 = vadd.f32 %v1118, %v1172
    %v1174 = vpop.f32.mrf.mxu0
    %1175 = vdwg.mxu0
    %v1176 = vadd.f32 %v43, %v1170
    %v1177 = vadd.f32 %v44, %v1173
    %v1178 = vld [vmem:[%s6] sm:$0x1]
    %v1179 = vld [vmem:[%s7] sm:$0x1]
    %v1180 = vsel %vm47, %v1176, 0.0
    %1181 = vadd.xlane.f32.xlu0 %v1180
    %v1182 = vpop.xlane.xlu0 %1181
    %v1183 = vsel %vm47, %v1177, 0.0
    %1184 = vadd.xlane.f32.xlu0 %v1183
    %v1185 = vpop.xlane.xlu0 %1184
    %v1186 = vmul.f32 %v1182, %v54
    %v1187 = vmul.f32 %v1185, %v54
    %v1188 = vsub.f32 %v1176, %v1186
    %v1189 = vsub.f32 %v1177, %v1187
    %v1190 = vmul.f32 %v1188, %v1188
    %v1191 = vmul.f32 %v1189, %v1189
    %v1192 = vsel %vm47, %v1190, 0.0
    %1193 = vadd.xlane.f32.xlu0 %v1192
    %v1194 = vpop.xlane.xlu0 %1193
    %v1195 = vsel %vm47, %v1191, 0.0
    %1196 = vadd.xlane.f32.xlu0 %v1195
    %v1197 = vpop.xlane.xlu0 %1196
    %v1198 = vmul.f32 %v1194, 0.032258064
    %v1199 = vmul.f32 %v1197, 0.032258064
    %v1200 = vrsqrt.pop %v1198
    %v1201 = vmul.f32 %v1198, %v1200
    %vm1202 = vcmp.eq.f32.partialorder %v1198, inf
    %v1203 = vsel %vm1202, %v1198, %v1201
    %vm1204 = vcmp.eq.f32.partialorder %v1198, 0.0
    %v1205 = vand.u32 %v1198, 2147483648
    %v1206 = vsel %vm1204, %v1205, %v1203
    %v1207 = vrsqrt.pop %v1199
    %v1208 = vmul.f32 %v1199, %v1207
    %vm1209 = vcmp.eq.f32.partialorder %v1199, inf
    %v1210 = vsel %vm1209, %v1199, %v1208
    %vm1211 = vcmp.eq.f32.partialorder %v1199, 0.0
    %v1212 = vand.u32 %v1199, 2147483648
    %v1213 = vsel %vm1211, %v1212, %v1210
    %v1214 = vadd.f32 %v1206, 1e-10
    %v1215 = vadd.f32 %v1213, 1e-10
    %v1216 = vrcp.pop %v1214
    %v1217 = vrcp.pop %v1215
    %v1218 = vmul.f32 %v1188, %v1216
    %v1219 = vmul.f32 %v1189, %v1217
    %v1221 = vlaneseq
    %v1222 = vshrl.u32 %v1221, 7
    %v1223 = vsub.s32 0, %v1222
    %v1224 = vrot.slane %v1178, %v1223
    %v1226 = vmul.f32 %v1218, %v1224
    %v1227 = vmul.f32 %v1219, %v1224
    %v1229 = vlaneseq
    %v1230 = vshrl.u32 %v1229, 7
    %v1231 = vsub.s32 0, %v1230
    %v1232 = vrot.slane %v1179, %v1231
    %v1234 = vadd.f32 %v1226, %v1232
    %v1235 = vadd.f32 %v1227, %v1232
    %v1236 = vpack.c.bf16 %v1235, %v1234
    %v1237 = vld [vmem:[%s8] sm:$0xf]
    %v1238 = vld [vmem:[%s8 + $0x4] sm:$0xf]
    %v1239 = vld [vmem:[%s8 + $0x8] sm:$0xf]
    %v1240 = vld [vmem:[%s8 + $0xc] sm:$0xf]
    %v1241 = vld [vmem:[%s9] sm:$0x1]
    %v1243 = vlaneseq
    %v1244 = vshrl.u32 %v1243, 7
    %v1245 = vsub.s32 0, %v1244
    %v1246 = vrot.slane %v1241, %v1245
    %v1252 = vunpack.c.l.b16 %v1237
    %v1253 = vunpack.c.l.b16 %v1238
    %v1254 = vunpack.c.l.b16 %v1239
    %v1255 = vunpack.c.l.b16 %v1240
    %v1256 = vpack.c.b16 %v1253, %v1252
    %v1257 = vpack.c.b16 %v1255, %v1254
    %v1261 = vsel %vm47, %v1236, 0
    %1263 = vmatprep.subr.bf16.mxu0 0
    %1264 = vmatpush1.bf16.msra.mxu0 0
    %1265 = vmatprep.subr.bf16.mxu0 0
    %1266 = vmatpush1.bf16.msra.mxu0 0
    %1267 = vmatprep.subr.bf16.mxu0 0
    %1268 = vmatpush1.bf16.msra.mxu0 0
    %1269 = vmatprep.subr.bf16.mxu0 0
    %1270 = vmatpush1.bf16.msra.mxu0 0
    %1271 = vmatprep.subr.bf16.mxu0 0
    %1272 = vmatpush1.bf16.msra.mxu0 0
    %1273 = vmatprep.subr.bf16.mxu0 0
    %1274 = vmatpush1.bf16.msra.mxu0 0
    %1275 = vmatprep.subr.bf16.mxu0 0
    %1276 = vmatpush1.bf16.msra.mxu0 %v1257
    %1277 = vmatprep.subr.bf16.mxu0 0
    %1278 = vmatpush1.bf16.msra.mxu0 %v1256
    %1279 = vmatprep.subr.bf16.mxu0 0
    %1280 = vmatpush2.bf16.msra.mxu0 0
    %1281 = vmatprep.subr.bf16.mxu0 0
    %1282 = vmatpush2.bf16.msra.mxu0 0
    %1283 = vmatprep.subr.bf16.mxu0 0
    %1284 = vmatpush2.bf16.msra.mxu0 0
    %1285 = vmatprep.subr.bf16.mxu0 0
    %1286 = vmatpush2.bf16.msra.mxu0 0
    %1287 = vmatprep.subr.bf16.mxu0 0
    %1288 = vmatpush2.bf16.msra.mxu0 0
    %1289 = vmatprep.subr.bf16.mxu0 0
    %1290 = vmatpush2.bf16.msra.mxu0 0
    %1291 = vmatprep.subr.bf16.mxu0 0
    %1292 = vmatpush2.bf16.msra.mxu0 0
    %1293 = vmatprep.subr.bf16.mxu0 0
    %1294 = vmatpush2.bf16.msra.mxu0 0
    %1295 = vmatprep.mubr.bf16.mxu0 0
    %1296 = vmatmul.mubr.bf16.gmra.mxu0 %v1261
    %v1297 = vpop.f32.mrf.mxu0
    %v1298 = vadd.f32 %v1246, %v1297
    %v1299 = vpop.f32.mrf.mxu0
    %v1300 = vpop.f32.mrf.mxu0
    %v1301 = vadd.f32 %v1246, %v1300
    %v1302 = vpop.f32.mrf.mxu0
    %1303 = vdwg.mxu0
    %v1304 = vmul.f32 %v1298, 0.5
    %v1305 = vmul.f32 %v1301, 0.5
    %v1306 = vmul.f32 %v1298, 0.044715
    %v1307 = vmul.f32 %v1301, 0.044715
    %v1308 = vmul.f32 %v1306, %v1298
    %v1309 = vmul.f32 %v1307, %v1301
    %v1310 = vmul.f32 %v1308, %v1298
    %v1311 = vmul.f32 %v1309, %v1301
    %v1312 = vadd.f32 %v1298, %v1310
    %v1313 = vadd.f32 %v1301, %v1311
    %v1314 = vmul.f32 %v1312, 0.7978846
    %v1315 = vmul.f32 %v1313, 0.7978846
    %v1316 = vtanh.pop %v1314
    %v1317 = vtanh.pop %v1315
    %v1318 = vadd.f32 %v1316, 1.0
    %v1319 = vadd.f32 %v1317, 1.0
    %v1320 = vmul.f32 %v1304, %v1318
    %v1321 = vmul.f32 %v1305, %v1319
    %v1322 = vpack.c.bf16 %v1321, %v1320
    %v1323 = vld [vmem:[%s10] sm:$0xf]
    %v1324 = vld [vmem:[%s10 + $0x4] sm:$0xf]
    %v1325 = vld [vmem:[%s10 + $0x8] sm:$0xf]
    %v1326 = vld [vmem:[%s10 + $0xc] sm:$0xf]
    %v1327 = vld [vmem:[%s10 + $0x10] sm:$0xf]
    %v1328 = vld [vmem:[%s10 + $0x14] sm:$0xf]
    %v1329 = vld [vmem:[%s10 + $0x18] sm:$0xf]
    %v1330 = vld [vmem:[%s10 + $0x1c] sm:$0xf]
    %v1331 = vld [vmem:[%s10 + $0x20] sm:$0xf]
    %v1332 = vld [vmem:[%s10 + $0x24] sm:$0xf]
    %v1333 = vld [vmem:[%s10 + $0x28] sm:$0xf]
    %v1334 = vld [vmem:[%s10 + $0x2c] sm:$0xf]
    %v1335 = vld [vmem:[%s10 + $0x30] sm:$0xf]
    %v1336 = vld [vmem:[%s10 + $0x34] sm:$0xf]
    %v1337 = vld [vmem:[%s10 + $0x38] sm:$0xf]
    %v1338 = vld [vmem:[%s10 + $0x3c] sm:$0xf]
    %v1339 = vld [vmem:[%s11] sm:$0x1]
    %v1341 = vlaneseq
    %v1342 = vshrl.u32 %v1341, 7
    %v1343 = vsub.s32 0, %v1342
    %v1344 = vrot.slane %v1339, %v1343
    %v1362 = vunpack.c.l.b16 %v1323
    %v1363 = vunpack.c.l.b16 %v1324
    %v1364 = vunpack.c.l.b16 %v1325
    %v1365 = vunpack.c.l.b16 %v1326
    %v1366 = vunpack.c.l.b16 %v1327
    %v1367 = vunpack.c.l.b16 %v1328
    %v1368 = vunpack.c.l.b16 %v1329
    %v1369 = vunpack.c.l.b16 %v1330
    %v1370 = vunpack.c.l.b16 %v1331
    %v1371 = vunpack.c.l.b16 %v1332
    %v1372 = vunpack.c.l.b16 %v1333
    %v1373 = vunpack.c.l.b16 %v1334
    %v1374 = vunpack.c.l.b16 %v1335
    %v1375 = vunpack.c.l.b16 %v1336
    %v1376 = vunpack.c.l.b16 %v1337
    %v1377 = vunpack.c.l.b16 %v1338
    %v1378 = vpack.c.b16 %v1363, %v1362
    %v1379 = vpack.c.b16 %v1365, %v1364
    %v1380 = vpack.c.b16 %v1367, %v1366
    %v1381 = vpack.c.b16 %v1369, %v1368
    %v1382 = vpack.c.b16 %v1371, %v1370
    %v1383 = vpack.c.b16 %v1373, %v1372
    %v1384 = vpack.c.b16 %v1375, %v1374
    %v1385 = vpack.c.b16 %v1377, %v1376
    %1394 = vmatprep.subr.bf16.mxu0 0
    %1395 = vmatpush1.bf16.msra.mxu0 %v1385
    %1396 = vmatprep.subr.bf16.mxu0 0
    %1397 = vmatpush1.bf16.msra.mxu0 %v1384
    %1398 = vmatprep.subr.bf16.mxu0 0
    %1399 = vmatpush1.bf16.msra.mxu0 %v1383
    %1400 = vmatprep.subr.bf16.mxu0 0
    %1401 = vmatpush1.bf16.msra.mxu0 %v1382
    %1402 = vmatprep.subr.bf16.mxu0 0
    %1403 = vmatpush1.bf16.msra.mxu0 %v1381
    %1404 = vmatprep.subr.bf16.mxu0 0
    %1405 = vmatpush1.bf16.msra.mxu0 %v1380
    %1406 = vmatprep.subr.bf16.mxu0 0
    %1407 = vmatpush1.bf16.msra.mxu0 %v1379
    %1408 = vmatprep.subr.bf16.mxu0 0
    %1409 = vmatpush1.bf16.msra.mxu0 %v1378
    %1410 = vmatprep.subr.bf16.mxu0 0
    %1411 = vmatpush2.bf16.msra.mxu0 0
    %1412 = vmatprep.subr.bf16.mxu0 0
    %1413 = vmatpush2.bf16.msra.mxu0 0
    %1414 = vmatprep.subr.bf16.mxu0 0
    %1415 = vmatpush2.bf16.msra.mxu0 0
    %1416 = vmatprep.subr.bf16.mxu0 0
    %1417 = vmatpush2.bf16.msra.mxu0 0
    %1418 = vmatprep.subr.bf16.mxu0 0
    %1419 = vmatpush2.bf16.msra.mxu0 0
    %1420 = vmatprep.subr.bf16.mxu0 0
    %1421 = vmatpush2.bf16.msra.mxu0 0
    %1422 = vmatprep.subr.bf16.mxu0 0
    %1423 = vmatpush2.bf16.msra.mxu0 0
    %1424 = vmatprep.subr.bf16.mxu0 0
    %1425 = vmatpush2.bf16.msra.mxu0 0
    %1426 = vmatprep.mubr.bf16.mxu0 0
    %1427 = vmatmul.mubr.bf16.gmra.mxu0 %v1322
    %v1428 = vpop.f32.mrf.mxu0
    %v1429 = vadd.f32 %v1344, %v1428
    %v1430 = vpop.f32.mrf.mxu0
    %v1431 = vpop.f32.mrf.mxu0
    %v1432 = vadd.f32 %v1344, %v1431
    %v1433 = vpop.f32.mrf.mxu0
    %1434 = vdwg.mxu0
    %v1435 = vadd.f32 %v1176, %v1429
    %v1436 = vadd.f32 %v1177, %v1432
    %1437 = vst.msk [vmem:[#allocation3] sm:$0xff] %vm47, %v1435
    %1438 = vst.msk [vmem:[#allocation3 + $0x8] sm:$0xff] %vm47, %v1436
    // Predicated region
    $region50: #{tpu_custom_call.1} parent=1 // pred_check
      _
    $region51: #{tpu_custom_call.1} parent=1 // pred_check_branch
      %1440 = sbr.rel (0) target = $region53
    $region52: #{tpu_custom_call.1} parent=1 // pred_region
      %s1442 = ssub.s32 256, 256
      %1443 = vsyncadd [#allocation4], %s1442
      %s1444 = sshll.u32 [#allocation3], 4
      %s1445 = int_to_ptr.vmem [resolvable:$true] %s1444
      %1450 = dma.vmem_to_hbm [thread:$0]  %s1445, 256, %s12, [#allocation4], 128, 128, 8
    $region53: #{tpu_custom_call.1} parent=1 // pred_fallthru
      _
    // Predicated region
    $region54: #{tpu_custom_call.1} parent=1 // pred_check
      _
    $region55: #{tpu_custom_call.1} parent=1 // pred_check_branch
      %1452 = sbr.rel (0) target = $region57
    $region56: #{tpu_custom_call.1} parent=1 // pred_region
      %1453 = dma.done [#allocation4], 256
    $region57: #{tpu_custom_call.1} parent=1 // pred_fallthru
      _
    %1454 = vsyncpa [#allocation4], 1

</llo_original>
